<compile_context>
chip_gen: v5e
topology: v5e:2x2
jax: 0.10.0
libtpu: 0.0.40
codegen_flags: <defaults>
</compile_context>

<pallas_src>
import functools

import jax
import jax.numpy as jnp
from jax.experimental import pallas as pl
from jax.experimental.pallas import tpu as pltpu


# ----------------------------- Pallas kernel ------------------------------ #
def _qconv_bn_relu_kernel(x_ref, w_ref, scale_ref, shift_ref, o_ref, patch_ref,
                          *, wp, mo):
    # x_ref:     (1, Lp, Cin) bf16  pre-quantized (integer-valued), zero-padded,
    #                               row-flattened NHWC image
    # w_ref:     (9*Cin, TC)  bf16  binarized (+/-1/0) weight, taps stacked on K
    # scale_ref: (1, TC)      f32   act_step * mean|w| * gamma / sqrt(var+eps)
    # shift_ref: (1, TC)      f32   beta - mean * gamma / sqrt(var+eps)
    # o_ref:     (1, Mo, TC)  f32   Mo = H * (W + 2) stride-1 output rows
    # patch_ref: (Mo, 9*Cin)  bf16  per-image im2col patch (VMEM scratch)

    # Build the im2col patch once per image; the j (Cout-tile) axis is
    # "arbitrary"/sequential, so j == 0 always runs first for each image and
    # the scratch persists across the remaining Cout tiles of that image.
    @pl.when(pl.program_id(1) == 0)
    def _():
        taps = []
        for k in range(9):
            off = (k // 3) * wp + (k % 3)          # static sublane offset
            taps.append(x_ref[0, off:off + mo, :])  # (Mo, Cin)
        patch_ref[...] = jnp.concatenate(taps, axis=-1)

    # Single K = 9*Cin matmul; epilogue fused, no f32 accumulator round-trips.
    y = jnp.dot(patch_ref[...], w_ref[...], preferred_element_type=jnp.float32)
    o_ref[0] = jnp.maximum(y * scale_ref[...] + shift_ref[...], 0.0)


def qconv3x3_bn_relu(x_flat, w_mat, scale, shift, *, wp, mo, tc):
    """x_flat: (N, Lp, Cin) bf16; w_mat: (9*Cin, Coutp) bf16 -> (N, Mo, Coutp) f32."""
    N, Lp, Cin = x_flat.shape
    K, Coutp = w_mat.shape

    kernel = functools.partial(_qconv_bn_relu_kernel, wp=wp, mo=mo)

    # Per-step VMEM estimate (double-buffered inputs/outputs + patch scratch),
    # with headroom; clamp to <=48 MiB so it is also safe on v7x (64 MiB VMEM).
    def _pad(v, m):
        return ((v + m - 1) // m) * m

    x_b = Lp * _pad(Cin, 128) * 2
    w_b = K * _pad(tc, 128) * 2
    o_b = mo * _pad(tc, 128) * 4
    patch_b = mo * _pad(K, 128) * 2
    est = 2 * (x_b + w_b + o_b + 2 * _pad(tc, 128) * 4) + patch_b
    vmem_limit = int(min(max(4 * est, 32 * 1024 * 1024), 48 * 1024 * 1024))

    return pl.pallas_call(
        kernel,
        out_shape=jax.ShapeDtypeStruct((N, mo, Coutp), jnp.float32),
        grid_spec=pltpu.PrefetchScalarGridSpec(
            num_scalar_prefetch=0,
            grid=(N, Coutp // tc),
            in_specs=[
                # whole padded image per step; constant in j -> reused across
                # Cout tiles without re-DMA.
                pl.BlockSpec((1, Lp, Cin), lambda n, j: (n, 0, 0)),
                pl.BlockSpec((K, tc), lambda n, j: (0, j)),
                pl.BlockSpec((1, tc), lambda n, j: (0, j)),
                pl.BlockSpec((1, tc), lambda n, j: (0, j)),
            ],
            out_specs=pl.BlockSpec((1, mo, tc), lambda n, j: (n, 0, j)),
            scratch_shapes=[pltpu.VMEM((mo, K), jnp.bfloat16)],
        ),
        compiler_params=pltpu.CompilerParams(
            # j must stay "arbitrary": the im2col scratch is written at j == 0
            # and reused for j > 0 of the same image on the same core.
            dimension_semantics=("parallel", "arbitrary"),
            vmem_limit_bytes=vmem_limit),
    )(x_flat, w_mat, scale, shift)


# ------------------------------- JAX glue --------------------------------- #
def basic_block_1w4a_forward(x, params, stride=1):
    """Forward of BasicBlock1_1w4a_A.  x: (N, Cin, H, W) f32 -> (N, Cout, Ho, Wo)."""
    N, Cin, H, W = x.shape
    w = params["conv_w"]                                      # (Cout, Cin, 3, 3)
    Cout = w.shape[0]
    eps = 1e-5

    # IR-Net 1-bit weight forward: bw = sign(w) * mean(|w|) per out channel.
    # (jnp.sign(0) == 0, matching the reference conv.)
    alpha = jnp.mean(jnp.abs(w), axis=(1, 2, 3))              # (Cout,)
    # taps stacked along K: row index = (kh*3 + kw)*Cin + cin.
    w_mat = jnp.transpose(jnp.sign(w), (2, 3, 1, 0)).reshape(9 * Cin, Cout)

    bn_scale = params["bn_gamma"] / jnp.sqrt(params["bn_var"] + eps)
    step = jnp.asarray(params["act_step"], jnp.float32)
    # dequant step * |w|-mean * BN scale folded into one per-channel scale.
    scale = step * alpha * bn_scale
    shift = params["bn_beta"] - params["bn_mean"] * bn_scale

    # Lane-dense channel padding (multiple of 128).
    Coutp = ((Cout + 127) // 128) * 128
    pad_c = Coutp - Cout
    w_mat = jnp.pad(w_mat, ((0, 0), (0, pad_c))).astype(jnp.bfloat16)
    scale = jnp.pad(scale, (0, pad_c)).reshape(1, Coutp).astype(jnp.float32)
    shift = jnp.pad(shift, (0, pad_c)).reshape(1, Coutp).astype(jnp.float32)

    # 4-bit LSQ activation quantization done once in the wrapper (fused by XLA
    # into the transpose/pad below).  Values are integers in [-8, 7] -> exact
    # in bf16, halving the kernel's HBM read vs f32.
    q = jnp.clip(jnp.round(x.astype(jnp.float32) * (1.0 / step)), -8.0, 7.0)
    q_nhwc = jnp.transpose(q, (0, 2, 3, 1))                   # (N, H, W, Cin)
    # Conv halo zero padding (+1 extra bottom row so every flattened 3x3 tap
    # window of the halo columns stays in bounds), then flatten spatial rows.
    qp = jnp.pad(q_nhwc, ((0, 0), (1, 2), (1, 1), (0, 0)))    # (N, H+3, W+2, Cin)
    Wp = W + 2
    x_flat = qp.reshape(N, (H + 3) * Wp, Cin).astype(jnp.bfloat16)

    mo = H * Wp                      # stride-1 output rows x padded width
    tc = 256 if (Coutp > 128 and Coutp % 256 == 0) else 128

    out = qconv3x3_bn_relu(x_flat, w_mat, scale, shift,
                           wp=Wp, mo=mo, tc=tc)               # (N, mo, Coutp)

    # Drop the 2 halo columns per row and the padded channels.
    out = out.reshape(N, H, Wp, Coutp)[:, :, :W, :Cout]
    if stride > 1:
        # stride-s, pad-1 3x3 conv == stride-1 conv subsampled at ::s.
        out = out[:, ::stride, ::stride, :]
    return jnp.transpose(out, (0, 3, 1, 2))                   # back to NCHW


def init_params(key, in_planes, planes):
    k1, k2, k3 = jax.random.split(key, 3)
    conv_w = jax.random.normal(k1, (planes, in_planes, 3, 3), jnp.float32) * 0.1
    return {
        "conv_w": conv_w,
        "act_step": 0.25,                                     # LSQ step size s
        "bn_gamma": 1.0 + 0.1 * jax.random.normal(k2, (planes,), jnp.float32),
        "bn_beta": 0.1 * jax.random.normal(k3, (planes,), jnp.float32),
        "bn_mean": jnp.zeros((planes,), jnp.float32),
        "bn_var": jnp.ones((planes,), jnp.float32),
    }


# ------------------------------ reference --------------------------------- #
def reference_forward(x, params, stride=1):
    w = params["conv_w"]
    alpha = jnp.mean(jnp.abs(w), axis=(1, 2, 3), keepdims=True)
    bw = jnp.sign(w) * alpha
    s = params["act_step"]
    qx = jnp.clip(jnp.round(x * (1.0 / s)), -8.0, 7.0) * s
    y = jax.lax.conv_general_dilated(
        qx, bw, window_strides=(stride, stride), padding=((1, 1), (1, 1)),
        dimension_numbers=("NCHW", "OIHW", "NCHW"))
    eps = 1e-5
    sc = (params["bn_gamma"] / jnp.sqrt(params["bn_var"] + eps)).reshape(1, -1, 1, 1)
    sh = (params["bn_beta"] - params["bn_mean"] *
          params["bn_gamma"] / jnp.sqrt(params["bn_var"] + eps)).reshape(1, -1, 1, 1)
    return jnp.maximum(y * sc + sh, 0.0)


if __name__ == "__main__":
    key = jax.random.PRNGKey(0)
    kx, kp = jax.random.split(key)

    N, Cin, H, W = 2, 4, 16, 16
    Cout, stride = 8, 1

    x = jax.random.normal(kx, (N, Cin, H, W), jnp.float32)
    params = init_params(kp, Cin, Cout)

    out = jax.block_until_ready(basic_block_1w4a_forward(x, params, stride))
    ref = jax.block_until_ready(reference_forward(x, params, stride))

    assert out.shape == (N, Cout, H, W), out.shape
    err = float(jnp.max(jnp.abs(out - ref)))
    assert err < 1e-4, err
    print("KERNEL_OK")
</pallas_src>

<mosaic_0001>
module attributes {stable_mosaic.version = 11 : i64} {
  func.func @_qconv_bn_relu_kernel(%arg0: i32, %arg1: i32, %arg2: memref<1x342x4xbf16, #tpu.memory_space<vmem>>, %arg3: memref<36x128xbf16, #tpu.memory_space<vmem>>, %arg4: memref<1x128xf32, #tpu.memory_space<vmem>>, %arg5: memref<1x128xf32, #tpu.memory_space<vmem>>, %arg6: memref<1x288x128xf32, #tpu.memory_space<vmem>>, %arg7: memref<288x36xbf16, #tpu.memory_space<vmem>>) attributes {dimension_semantics = [#tpu.dimension_semantics<parallel>, #tpu.dimension_semantics<arbitrary>], iteration_bounds = array<i64: 2, 1>, scalar_prefetch = 0 : i64, scratch_operands = 1 : i64, tpu.core_type = #tpu.core_type<tc>, window_params = [{transform_indices = @transform_0, window_bounds = array<i64: 1, 342, 4>}, {transform_indices = @transform_1, window_bounds = array<i64: 36, 128>}, {transform_indices = @transform_2, window_bounds = array<i64: 1, 128>}, {transform_indices = @transform_3, window_bounds = array<i64: 1, 128>}, {transform_indices = @transform_4, window_bounds = array<i64: 1, 288, 128>}]} {
    %c0_i32 = arith.constant 0 : i32
    %0 = arith.cmpi eq, %arg1, %c0_i32 : i32
    %1 = arith.extui %0 : i1 to i32
    %c0_i32_0 = arith.constant 0 : i32
    %2 = arith.cmpi ne, %1, %c0_i32_0 : i32
    scf.if %2 {
      %c0_12 = arith.constant 0 : index
      %c0_13 = arith.constant 0 : index
      %c0_14 = arith.constant 0 : index
      %17 = vector.load %arg2[%c0_12, %c0_13, %c0_14] : memref<1x342x4xbf16, #tpu.memory_space<vmem>>, vector<1x288x4xbf16>
      %18 = vector.shape_cast %17 : vector<1x288x4xbf16> to vector<288x4xbf16>
      %c0_15 = arith.constant 0 : index
      %c1 = arith.constant 1 : index
      %c0_16 = arith.constant 0 : index
      %19 = vector.load %arg2[%c0_15, %c1, %c0_16] : memref<1x342x4xbf16, #tpu.memory_space<vmem>>, vector<1x288x4xbf16>
      %20 = vector.shape_cast %19 : vector<1x288x4xbf16> to vector<288x4xbf16>
      %c0_17 = arith.constant 0 : index
      %c2 = arith.constant 2 : index
      %c0_18 = arith.constant 0 : index
      %21 = vector.load %arg2[%c0_17, %c2, %c0_18] : memref<1x342x4xbf16, #tpu.memory_space<vmem>>, vector<1x288x4xbf16>
      %22 = vector.shape_cast %21 : vector<1x288x4xbf16> to vector<288x4xbf16>
      %c0_19 = arith.constant 0 : index
      %c18 = arith.constant 18 : index
      %c0_20 = arith.constant 0 : index
      %23 = vector.load %arg2[%c0_19, %c18, %c0_20] : memref<1x342x4xbf16, #tpu.memory_space<vmem>>, vector<1x288x4xbf16>
      %24 = vector.shape_cast %23 : vector<1x288x4xbf16> to vector<288x4xbf16>
      %c0_21 = arith.constant 0 : index
      %c19 = arith.constant 19 : index
      %c0_22 = arith.constant 0 : index
      %25 = vector.load %arg2[%c0_21, %c19, %c0_22] : memref<1x342x4xbf16, #tpu.memory_space<vmem>>, vector<1x288x4xbf16>
      %26 = vector.shape_cast %25 : vector<1x288x4xbf16> to vector<288x4xbf16>
      %c0_23 = arith.constant 0 : index
      %c20 = arith.constant 20 : index
      %c0_24 = arith.constant 0 : index
      %27 = vector.load %arg2[%c0_23, %c20, %c0_24] : memref<1x342x4xbf16, #tpu.memory_space<vmem>>, vector<1x288x4xbf16>
      %28 = vector.shape_cast %27 : vector<1x288x4xbf16> to vector<288x4xbf16>
      %c0_25 = arith.constant 0 : index
      %c36 = arith.constant 36 : index
      %c0_26 = arith.constant 0 : index
      %29 = vector.load %arg2[%c0_25, %c36, %c0_26] : memref<1x342x4xbf16, #tpu.memory_space<vmem>>, vector<1x288x4xbf16>
      %30 = vector.shape_cast %29 : vector<1x288x4xbf16> to vector<288x4xbf16>
      %c0_27 = arith.constant 0 : index
      %c37 = arith.constant 37 : index
      %c0_28 = arith.constant 0 : index
      %31 = vector.load %arg2[%c0_27, %c37, %c0_28] : memref<1x342x4xbf16, #tpu.memory_space<vmem>>, vector<1x288x4xbf16>
      %32 = vector.shape_cast %31 : vector<1x288x4xbf16> to vector<288x4xbf16>
      %c0_29 = arith.constant 0 : index
      %c38 = arith.constant 38 : index
      %c0_30 = arith.constant 0 : index
      %33 = vector.load %arg2[%c0_29, %c38, %c0_30] : memref<1x342x4xbf16, #tpu.memory_space<vmem>>, vector<1x288x4xbf16>
      %34 = vector.shape_cast %33 : vector<1x288x4xbf16> to vector<288x4xbf16>
      %35 = tpu.concatenate %18, %20, %22, %24, %26, %28, %30, %32, %34 in 1 : vector<288x4xbf16>, vector<288x4xbf16>, vector<288x4xbf16>, vector<288x4xbf16>, vector<288x4xbf16>, vector<288x4xbf16>, vector<288x4xbf16>, vector<288x4xbf16>, vector<288x4xbf16> -> vector<288x36xbf16>
      %c0_31 = arith.constant 0 : index
      %c0_32 = arith.constant 0 : index
      %36 = vector.load %arg7[%c0_31, %c0_32] : memref<288x36xbf16, #tpu.memory_space<vmem>>, vector<288x36xbf16>
      tpu.vector_store %arg7[%c0_31, %c0_32], %35 {strides = array<i32>} : memref<288x36xbf16, #tpu.memory_space<vmem>>, vector<288x36xbf16>,
    } else {
    }
    %c0 = arith.constant 0 : index
    %c0_1 = arith.constant 0 : index
    %3 = vector.load %arg7[%c0, %c0_1] : memref<288x36xbf16, #tpu.memory_space<vmem>>, vector<288x36xbf16>
    %c0_2 = arith.constant 0 : index
    %c0_3 = arith.constant 0 : index
    %4 = vector.load %arg3[%c0_2, %c0_3] : memref<36x128xbf16, #tpu.memory_space<vmem>>, vector<36x128xbf16>
    %cst = arith.constant dense<0.000000e+00> : vector<288x128xf32>
    %5 = tpu.matmul %3, %4, %cst {dimension_numbers = #tpu.dot_dimension_numbers<[1], [0], [0], [1], [0, 0, 1, 1], [], []>} : vector<288x36xbf16>, vector<36x128xbf16>, vector<288x128xf32> -> vector<288x128xf32>
    %c0_4 = arith.constant 0 : index
    %c0_5 = arith.constant 0 : index
    %6 = vector.load %arg4[%c0_4, %c0_5] : memref<1x128xf32, #tpu.memory_space<vmem>>, vector<1x128xf32>
    %7 = vector.broadcast %6 : vector<1x128xf32> to vector<288x128xf32>
    %8 = arith.mulf %5, %7 : vector<288x128xf32>
    %c0_6 = arith.constant 0 : index
    %c0_7 = arith.constant 0 : index
    %9 = vector.load %arg5[%c0_6, %c0_7] : memref<1x128xf32, #tpu.memory_space<vmem>>, vector<1x128xf32>
    %10 = vector.broadcast %9 : vector<1x128xf32> to vector<288x128xf32>
    %11 = arith.addf %8, %10 : vector<288x128xf32>
    %cst_8 = arith.constant 0.000000e+00 : f32
    %12 = vector.broadcast %cst_8 : f32 to vector<288x128xf32>
    %13 = arith.maximumf %11, %12 : vector<288x128xf32>
    %c0_9 = arith.constant 0 : index
    %c0_10 = arith.constant 0 : index
    %c0_11 = arith.constant 0 : index
    %14 = vector.load %arg6[%c0_9, %c0_10, %c0_11] : memref<1x288x128xf32, #tpu.memory_space<vmem>>, vector<1x288x128xf32>
    %15 = vector.shape_cast %14 : vector<1x288x128xf32> to vector<288x128xf32>
    %16 = vector.shape_cast %13 : vector<288x128xf32> to vector<1x288x128xf32>
    tpu.vector_store %arg6[%c0_9, %c0_10, %c0_11], %16 {strides = array<i32>} : memref<1x288x128xf32, #tpu.memory_space<vmem>>, vector<1x288x128xf32>,
    return
  }
  func.func @transform_0(%arg0: i32, %arg1: i32) -> (i32, i32, i32) {
    %c0_i32 = arith.constant 0 : i32
    %c0_i32_0 = arith.constant 0 : i32
    %c0_i32_1 = arith.constant 0 : i32
    return %arg0, %c0_i32, %c0_i32_0 : i32, i32, i32
  }
  func.func @transform_1(%arg0: i32, %arg1: i32) -> (i32, i32) {
    %c0_i32 = arith.constant 0 : i32
    %c0_i32_0 = arith.constant 0 : i32
    return %c0_i32, %arg1 : i32, i32
  }
  func.func @transform_2(%arg0: i32, %arg1: i32) -> (i32, i32) {
    %c0_i32 = arith.constant 0 : i32
    %c0_i32_0 = arith.constant 0 : i32
    return %c0_i32, %arg1 : i32, i32
  }
  func.func @transform_3(%arg0: i32, %arg1: i32) -> (i32, i32) {
    %c0_i32 = arith.constant 0 : i32
    %c0_i32_0 = arith.constant 0 : i32
    return %c0_i32, %arg1 : i32, i32
  }
  func.func @transform_4(%arg0: i32, %arg1: i32) -> (i32, i32, i32) {
    %c0_i32 = arith.constant 0 : i32
    %c0_i32_0 = arith.constant 0 : i32
    return %arg0, %c0_i32, %arg1 : i32, i32, i32
  }
}

</mosaic_0001>

<llo_original>
// kernel: tpu_custom_call.1
$region0: #{tpu_custom_call.1}
  #allocation0 [shape = 'u32[]', space=smem, size = 0x4, offset = 0x4, fixed_abs, tag = 'smem constant byte address 0x4 - core index']
  #allocation1 [shape = 'u32[72,128]{1,0:T(1,128)}', space=vmem, size = 0x9000, scoped, tag = 'internal scratch']
  #allocation2 [shape = 'bf16[288,36]{1,0:T(8,128)(2,1)}', space=vmem, size = 0x12000, scoped, tag = 'scratch operand']
  %s0 = inlined_call_operand.vmem [shape: bf16[2,342,4], index: 0, kind: input, shape index: {}]
  %s1 = inlined_call_operand.vmem [shape: bf16[36,128], index: 1, kind: input, shape index: {}]
  %s2 = inlined_call_operand.vmem [shape: f32[1,128], index: 2, kind: input, shape index: {}]
  %s3 = inlined_call_operand.vmem [shape: f32[1,128], index: 3, kind: input, shape index: {}]
  %s4 = inlined_call_operand.hbm [shape: f32[2,288,128], index: 4, kind: output, shape index: {}]
  %s5 = sld [smem:[#allocation0]]
  $region53: #{tpu_custom_call.1} parent=0
    _
  %s7 = ssub.s32 1, %s5
  %s8 = scalar_select 0, %s7, %s5
  $region1: #{tpu_custom_call.1} parent=0
    #allocation3 [shape = 'u8[294912]{0}', space=vmem, size = 0x48000, scoped, tag = 'output window, operand 0']
    #allocation4 [shape = 's32[2]{0}', space=sflag, size = 0x8, scoped, tag = 'scoped memory for tpu_custom_call.1']
    %9 = vsyncpa [#allocation4], 0
    %s10 = scalar_lea.sflag [#allocation4], 1
    %11 = vsyncpa %s10, 0
    loop: start=0, step=1, limit=4
    $region2: #{tpu_custom_call.1} parent=1 // loop_pre_header
      _
    $region3: #{tpu_custom_call.1} parent=1 // loop_header
      %s13 = sphi 0, %s17
      %p14 = scmp.ge.s32.totalorder %s13, 4
      %s20 = sphi 0, %s32
      %s21 = sphi 0, %s28
      %s22 = sphi 0, %s20
      %s23 = sphi 0, %s21
      %s24 = sphi 0, %s22
      %s25 = sphi 0, %s23
      %s35 = sphi 0, %s37
      %s38 = sphi 0, %s35
      %s39 = sphi 0, %s38
      %s55 = sphi 0, %s39
      %s61 = sphi 0, %s63
      %s64 = sphi 0, %s61
      %s65 = sphi 0, %s64
      %s81 = sphi 0, %s65
      %s87 = sphi 0, %s89
      %s90 = sphi 0, %s87
      %s91 = sphi 0, %s90
      %s107 = sphi 0, %s91
      %s113 = sphi 0, %s115
      %s116 = sphi 0, %s113
      %s117 = sphi 0, %s116
      %s133 = sphi 0, %s117
      %s141 = sphi 0, %s143
      %s144 = sphi 0, %s141
      %s145 = sphi 0, %s144
      %s161 = sphi 0, %s145
    $region4: #{tpu_custom_call.1} parent=1 // loop_header_branch
      %16 = sbr.rel (%p14) target = $region8
    $region5: #{tpu_custom_call.1} parent=1 // loop_body
      %s18 = ssub.s32 %s13, 1
      %s19 = ssub.s32 %s13, 2
      %s26 = sadd.s32 1, %s21
      %p27 = scmp.ge.s32.totalorder %s26, 1
      %s28 = scalar_select %p27, 0, %s26
      %s29 = sadd.s32 1, %s20
      %s30 = scalar_select %p27, %s29, %s20
      %p31 = scmp.ge.s32.totalorder %s30, 2
      %s32 = scalar_select %p31, 0, %s30
      %s33 = ssub.s32 %s20, %s32
      %p34 = scmp.eq.s32.totalorder %s33, 0
      %s36 = sadd.s32 %s35, 1
      %s37 = scalar_select %p34, %s35, %s36
      %p40 = pneg %p34
      %p41 = scmp.eq.s32.totalorder %s13, 1
      %p42 = por %p40, %p41
      %p43 = scmp.ne.s32.totalorder %s35, %s38
      %p44 = scmp.eq.s32.totalorder %s13, 0
      %p45 = por %p43, %p44
      %p46 = scmp.ne.s32.totalorder %s35, %s38
      %p47 = scmp.eq.s32.totalorder %s18, 1
      %p48 = por %p46, %p47
      %p49 = scmp.ne.s32.totalorder %s38, %s39
      %p50 = scmp.eq.s32.totalorder %s18, 0
      %p51 = por %p49, %p50
      %p52 = scmp.ne.s32.totalorder %s38, %s39
      %p53 = scmp.eq.s32.totalorder %s19, 1
      %p54 = por %p52, %p53
      %p56 = scmp.ne.s32.totalorder %s39, %s55
      %p57 = scmp.eq.s32.totalorder %s19, 0
      %p58 = por %p56, %p57
      %s59 = ssub.s32 %s21, %s28
      %p60 = scmp.eq.s32.totalorder %s59, 0
      %s62 = sadd.s32 %s61, 1
      %s63 = scalar_select %p60, %s61, %s62
      %p66 = pneg %p60
      %p67 = scmp.eq.s32.totalorder %s13, 1
      %p68 = por %p66, %p67
      %p69 = scmp.ne.s32.totalorder %s61, %s64
      %p70 = scmp.eq.s32.totalorder %s13, 0
      %p71 = por %p69, %p70
      %p72 = scmp.ne.s32.totalorder %s61, %s64
      %p73 = scmp.eq.s32.totalorder %s18, 1
      %p74 = por %p72, %p73
      %p75 = scmp.ne.s32.totalorder %s64, %s65
      %p76 = scmp.eq.s32.totalorder %s18, 0
      %p77 = por %p75, %p76
      %p78 = scmp.ne.s32.totalorder %s64, %s65
      %p79 = scmp.eq.s32.totalorder %s19, 1
      %p80 = por %p78, %p79
      %p82 = scmp.ne.s32.totalorder %s65, %s81
      %p83 = scmp.eq.s32.totalorder %s19, 0
      %p84 = por %p82, %p83
      %s85 = ssub.s32 %s21, %s28
      %p86 = scmp.eq.s32.totalorder %s85, 0
      %s88 = sadd.s32 %s87, 1
      %s89 = scalar_select %p86, %s87, %s88
      %p92 = pneg %p86
      %p93 = scmp.eq.s32.totalorder %s13, 1
      %p94 = por %p92, %p93
      %p95 = scmp.ne.s32.totalorder %s87, %s90
      %p96 = scmp.eq.s32.totalorder %s13, 0
      %p97 = por %p95, %p96
      %p98 = scmp.ne.s32.totalorder %s87, %s90
      %p99 = scmp.eq.s32.totalorder %s18, 1
      %p100 = por %p98, %p99
      %p101 = scmp.ne.s32.totalorder %s90, %s91
      %p102 = scmp.eq.s32.totalorder %s18, 0
      %p103 = por %p101, %p102
      %p104 = scmp.ne.s32.totalorder %s90, %s91
      %p105 = scmp.eq.s32.totalorder %s19, 1
      %p106 = por %p104, %p105
      %p108 = scmp.ne.s32.totalorder %s91, %s107
      %p109 = scmp.eq.s32.totalorder %s19, 0
      %p110 = por %p108, %p109
      %s111 = ssub.s32 %s21, %s28
      %p112 = scmp.eq.s32.totalorder %s111, 0
      %s114 = sadd.s32 %s113, 1
      %s115 = scalar_select %p112, %s113, %s114
      %p118 = pneg %p112
      %p119 = scmp.eq.s32.totalorder %s13, 1
      %p120 = por %p118, %p119
      %p121 = scmp.ne.s32.totalorder %s113, %s116
      %p122 = scmp.eq.s32.totalorder %s13, 0
      %p123 = por %p121, %p122
      %p124 = scmp.ne.s32.totalorder %s113, %s116
      %p125 = scmp.eq.s32.totalorder %s18, 1
      %p126 = por %p124, %p125
      %p127 = scmp.ne.s32.totalorder %s116, %s117
      %p128 = scmp.eq.s32.totalorder %s18, 0
      %p129 = por %p127, %p128
      %p130 = scmp.ne.s32.totalorder %s116, %s117
      %p131 = scmp.eq.s32.totalorder %s19, 1
      %p132 = por %p130, %p131
      %p134 = scmp.ne.s32.totalorder %s117, %s133
      %p135 = scmp.eq.s32.totalorder %s19, 0
      %p136 = por %p134, %p135
      %s137 = ssub.s32 %s20, %s32
      %s138 = ssub.s32 %s21, %s28
      %s139 = sor.u32 %s137, %s138
      %p140 = scmp.eq.s32.totalorder %s139, 0
      %s142 = sadd.s32 %s141, 1
      %s143 = scalar_select %p140, %s141, %s142
      %p146 = pneg %p140
      %p147 = scmp.eq.s32.totalorder %s13, 1
      %p148 = por %p146, %p147
      %p149 = scmp.ne.s32.totalorder %s141, %s144
      %p150 = scmp.eq.s32.totalorder %s13, 0
      %p151 = por %p149, %p150
      %p152 = scmp.ne.s32.totalorder %s141, %s144
      %p153 = scmp.eq.s32.totalorder %s18, 1
      %p154 = por %p152, %p153
      %p155 = scmp.ne.s32.totalorder %s144, %s145
      %p156 = scmp.eq.s32.totalorder %s18, 0
      %p157 = por %p155, %p156
      %p158 = scmp.ne.s32.totalorder %s144, %s145
      %p159 = scmp.eq.s32.totalorder %s19, 1
      %p160 = por %p158, %p159
      %p162 = scmp.ne.s32.totalorder %s145, %s161
      %p163 = scmp.eq.s32.totalorder %s19, 0
      %p164 = por %p162, %p163
      %p165 = scmp.le.s32.totalorder 1, %s13
      %p166 = scmp.lt.s32.totalorder %s13, 3
      %p167 = pnand %p165, %p166
      %p168 = pneg %p167
      // Predicated region
      $region9: #{tpu_custom_call.1} parent=5 // pred_check
        _
      $region10: #{tpu_custom_call.1} parent=5 // pred_check_branch
        %170 = sbr.rel (%p167) target = $region12
      $region11: #{tpu_custom_call.1} parent=5 // pred_region
        %s171 = ssub.s32 %s13, 1
        // Predicated region
        $region13: #{tpu_custom_call.1} parent=11 // pred_check
          %p172 = pneg %p77
        $region14: #{tpu_custom_call.1} parent=11 // pred_check_branch
          %174 = sbr.rel (%p172) target = $region16
        $region15: #{tpu_custom_call.1} parent=11 // pred_region
          %p175 = scmp.lt.s32.totalorder %s23, 0
          %s176 = scalar_select %p175, %s23, 0
          %s177 = smul.addr %s176, 4
          %s178 = scalar_lea.vmem %s1, %s177
        $region16: #{tpu_custom_call.1} parent=11 // pred_fallthru
          _
        // Predicated region
        $region17: #{tpu_custom_call.1} parent=11 // pred_check
          %p179 = pneg %p103
        $region18: #{tpu_custom_call.1} parent=11 // pred_check_branch
          %181 = sbr.rel (%p179) target = $region20
        $region19: #{tpu_custom_call.1} parent=11 // pred_region
          %p182 = scmp.lt.s32.totalorder %s23, 0
          %s183 = scalar_select %p182, %s23, 0
          %s184 = scalar_lea.vmem %s2, %s183
        $region20: #{tpu_custom_call.1} parent=11 // pred_fallthru
          _
        // Predicated region
        $region21: #{tpu_custom_call.1} parent=11 // pred_check
          %p185 = pneg %p129
        $region22: #{tpu_custom_call.1} parent=11 // pred_check_branch
          %187 = sbr.rel (%p185) target = $region24
        $region23: #{tpu_custom_call.1} parent=11 // pred_region
          %p188 = scmp.lt.s32.totalorder %s23, 0
          %s189 = scalar_select %p188, %s23, 0
          %s190 = scalar_lea.vmem %s3, %s189
        $region24: #{tpu_custom_call.1} parent=11 // pred_fallthru
          _
      $region12: #{tpu_custom_call.1} parent=5 // pred_fallthru
        _
      %p191 = scmp.lt.s32.totalorder %s13, 2
      // Predicated region
      $region25: #{tpu_custom_call.1} parent=5 // pred_check
        %p192 = pneg %p191
      $region26: #{tpu_custom_call.1} parent=5 // pred_check_branch
        %194 = sbr.rel (%p192) target = $region28
      $region27: #{tpu_custom_call.1} parent=5 // pred_region
        // Predicated region
        $region29: #{tpu_custom_call.1} parent=27 // pred_check
          %p195 = pneg %p45
        $region30: #{tpu_custom_call.1} parent=27 // pred_check_branch
          %197 = sbr.rel (%p195) target = $region32
        $region31: #{tpu_custom_call.1} parent=27 // pred_region
          %p198 = scmp.lt.s32.totalorder %s20, 1
          %s199 = scalar_select %p198, %s20, 1
          %s200 = smul.addr %s199, 43
          %s201 = smul.addr %s200, 4
          %s202 = scalar_lea.vmem %s0, %s201
        $region32: #{tpu_custom_call.1} parent=27 // pred_fallthru
          _
      $region28: #{tpu_custom_call.1} parent=5 // pred_fallthru
        _
      %p203 = scmp.le.s32.totalorder 1, %s13
      %p204 = scmp.lt.s32.totalorder %s13, 3
      %p205 = pnand %p203, %p204
      %p206 = pneg %p205
      // Predicated region
      $region33: #{tpu_custom_call.1} parent=5 // pred_check
        _
      $region34: #{tpu_custom_call.1} parent=5 // pred_check_branch
        %208 = sbr.rel (%p205) target = $region36
      $region35: #{tpu_custom_call.1} parent=5 // pred_region
        %s209 = ssub.s32 %s13, 1
        %p210 = scmp.lt.s32.totalorder %s22, 1
        %s211 = scalar_select %p210, %s22, 1
        %s212 = smul.addr %s211, 43
        %s213 = smul.addr %s212, 4
        %s214 = scalar_lea.vmem %s0, %s213
        %p215 = pneg %p51
        %p216 = pneg %p48
        %p217 = scmp.lt.s32.totalorder %s23, 0
        %s218 = scalar_select %p217, %s23, 0
        %s219 = smul.addr %s218, 4
        %s220 = scalar_lea.vmem %s1, %s219
        %p221 = pneg %p77
        %p222 = pneg %p74
        %p223 = scmp.lt.s32.totalorder %s23, 0
        %s224 = scalar_select %p223, %s23, 0
        %s225 = scalar_lea.vmem %s2, %s224
        %p226 = pneg %p103
        %p227 = pneg %p100
        %p228 = scmp.lt.s32.totalorder %s23, 0
        %s229 = scalar_select %p228, %s23, 0
        %s230 = scalar_lea.vmem %s3, %s229
        %p231 = pneg %p129
        %p232 = pneg %p126
        %p233 = pneg %p157
        %p234 = pneg %p154
        %s235 = sand.u32 %s144, 1
        %s236 = scalar_lea.sflag [#allocation4], %s235
        %s237 = sand.u32 %s144, 1
        %s238 = smul.addr %s237, 288
        %s239 = scalar_lea.vmem [#allocation3], %s238
        %p240 = scmp.lt.s32.totalorder %s22, 1
        %s241 = scalar_select %p240, %s22, 1
        %s242 = smul.addr %s241, 43
        %s243 = smul.addr %s242, 4
        %s244 = scalar_lea.vmem %s0, %s243
        %p245 = scmp.lt.s32.totalorder %s23, 0
        %s246 = scalar_select %p245, %s23, 0
        %s247 = smul.addr %s246, 4
        %s248 = scalar_lea.vmem %s1, %s247
        %p249 = scmp.lt.s32.totalorder %s23, 0
        %s250 = scalar_select %p249, %s23, 0
        %s251 = scalar_lea.vmem %s2, %s250
        %p252 = scmp.lt.s32.totalorder %s23, 0
        %s253 = scalar_select %p252, %s23, 0
        %s254 = scalar_lea.vmem %s3, %s253
        %p256 = scmp.eq.s32.totalorder %s23, 0
        // Predicated region
        $region37: #{tpu_custom_call.1} parent=35 // pred_check
          %p257 = pneg %p256
        $region38: #{tpu_custom_call.1} parent=35 // pred_check_branch
          %259 = sbr.rel (%p257) target = $region40
        $region39: #{tpu_custom_call.1} parent=35 // pred_region
          %v260 = vld [vmem:[%s244] sm:$0xf]
          %v261 = vld [vmem:[%s244 + $0x4] sm:$0xf]
          %v262 = vld [vmem:[%s244 + $0x8] sm:$0xf]
          %v263 = vld [vmem:[%s244 + $0xc] sm:$0xf]
          %v264 = vld [vmem:[%s244 + $0x10] sm:$0xf]
          %v265 = vld [vmem:[%s244 + $0x14] sm:$0xf]
          %v266 = vld [vmem:[%s244 + $0x18] sm:$0xf]
          %v267 = vld [vmem:[%s244 + $0x1c] sm:$0xf]
          %v268 = vld [vmem:[%s244 + $0x20] sm:$0xf]
          %v269 = vld [vmem:[%s244 + $0x24] sm:$0xf]
          %v270 = vld [vmem:[%s244 + $0x28] sm:$0xf]
          %v271 = vld [vmem:[%s244 + $0x2c] sm:$0xf]
          %v272 = vld [vmem:[%s244 + $0x30] sm:$0xf]
          %v273 = vld [vmem:[%s244 + $0x34] sm:$0xf]
          %v274 = vld [vmem:[%s244 + $0x38] sm:$0xf]
          %v275 = vld [vmem:[%s244 + $0x3c] sm:$0xf]
          %v276 = vld [vmem:[%s244 + $0x40] sm:$0xf]
          %v277 = vld [vmem:[%s244 + $0x44] sm:$0xf]
          %v278 = vld [vmem:[%s244 + $0x48] sm:$0xf]
          %v279 = vld [vmem:[%s244 + $0x4c] sm:$0xf]
          %v280 = vld [vmem:[%s244 + $0x50] sm:$0xf]
          %v281 = vld [vmem:[%s244 + $0x54] sm:$0xf]
          %v282 = vld [vmem:[%s244 + $0x58] sm:$0xf]
          %v283 = vld [vmem:[%s244 + $0x5c] sm:$0xf]
          %v284 = vld [vmem:[%s244 + $0x60] sm:$0xf]
          %v285 = vld [vmem:[%s244 + $0x64] sm:$0xf]
          %v286 = vld [vmem:[%s244 + $0x68] sm:$0xf]
          %v287 = vld [vmem:[%s244 + $0x6c] sm:$0xf]
          %v288 = vld [vmem:[%s244 + $0x70] sm:$0xf]
          %v289 = vld [vmem:[%s244 + $0x74] sm:$0xf]
          %v290 = vld [vmem:[%s244 + $0x78] sm:$0xf]
          %v291 = vld [vmem:[%s244 + $0x7c] sm:$0xf]
          %v292 = vld [vmem:[%s244 + $0x80] sm:$0xf]
          %v293 = vld [vmem:[%s244 + $0x84] sm:$0xf]
          %v294 = vld [vmem:[%s244 + $0x88] sm:$0xf]
          %v295 = vld [vmem:[%s244 + $0x8c] sm:$0xf]
          %v296 = vld [vmem:[%s244 + $0x90] sm:$0x1]
          %v297 = vld [vmem:[%s244] sm:$0xe]
          %v298 = vld [vmem:[%s244 + $0x8] sm:$0xe]
          %v299 = vld [vmem:[%s244 + $0x90] sm:$0xf]
          %v300 = vld [vmem:[%s244 + $0x94] sm:$0xf]
          %v301 = vld [vmem:[%s244 + $0x98] sm:$0x1]
          %v302 = vld [vmem:[%s244 + $0x98] sm:$0x3]
          %v303 = vld [vmem:[%s244 + $0x8] sm:$0xc]
          %v304 = vld [vmem:[%s244 + $0x10] sm:$0xc]
          %v305 = vld [vmem:[%s244 + $0x98] sm:$0xf]
          %v306 = vld [vmem:[%s244 + $0x9c] sm:$0xf]
          %v307 = vld [vmem:[%s244 + $0xa0] sm:$0x3]
          %v308 = vld [vmem:[%s244 + $0xa0] sm:$0x7]
          %v309 = vld [vmem:[%s244 + $0x10] sm:$0x8]
          %v346 = vunpack.c.l.b16 %v260
          %v347 = vunpack.c.l.b16 %v261
          %v348 = vunpack.c.l.b16 %v262
          %v349 = vunpack.c.l.b16 %v263
          %v350 = vunpack.c.l.b16 %v264
          %v351 = vunpack.c.l.b16 %v265
          %v352 = vunpack.c.l.b16 %v266
          %v353 = vunpack.c.l.b16 %v267
          %v354 = vunpack.c.l.b16 %v268
          %v355 = vunpack.c.l.b16 %v269
          %v356 = vunpack.c.l.b16 %v270
          %v357 = vunpack.c.l.b16 %v271
          %v358 = vunpack.c.l.b16 %v272
          %v359 = vunpack.c.l.b16 %v273
          %v360 = vunpack.c.l.b16 %v274
          %v361 = vunpack.c.l.b16 %v275
          %v362 = vunpack.c.l.b16 %v276
          %v363 = vunpack.c.l.b16 %v277
          %v364 = vunpack.c.l.b16 %v278
          %v365 = vunpack.c.l.b16 %v279
          %v366 = vunpack.c.l.b16 %v280
          %v367 = vunpack.c.l.b16 %v281
          %v368 = vunpack.c.l.b16 %v282
          %v369 = vunpack.c.l.b16 %v283
          %v370 = vunpack.c.l.b16 %v284
          %v371 = vunpack.c.l.b16 %v285
          %v372 = vunpack.c.l.b16 %v286
          %v373 = vunpack.c.l.b16 %v287
          %v374 = vunpack.c.l.b16 %v288
          %v375 = vunpack.c.l.b16 %v289
          %v376 = vunpack.c.l.b16 %v290
          %v377 = vunpack.c.l.b16 %v291
          %v378 = vunpack.c.l.b16 %v292
          %v379 = vunpack.c.l.b16 %v293
          %v380 = vunpack.c.l.b16 %v294
          %v381 = vunpack.c.l.b16 %v295
          %v382 = vpack.c.b16 %v347, %v346
          %v383 = vpack.c.b16 %v349, %v348
          %v384 = vpack.c.b16 %v351, %v350
          %v385 = vpack.c.b16 %v353, %v352
          %v386 = vpack.c.b16 %v355, %v354
          %v387 = vpack.c.b16 %v357, %v356
          %v388 = vpack.c.b16 %v359, %v358
          %v389 = vpack.c.b16 %v361, %v360
          %v390 = vpack.c.b16 %v363, %v362
          %v391 = vpack.c.b16 %v365, %v364
          %v392 = vpack.c.b16 %v367, %v366
          %v393 = vpack.c.b16 %v369, %v368
          %v394 = vpack.c.b16 %v371, %v370
          %v395 = vpack.c.b16 %v373, %v372
          %v396 = vpack.c.b16 %v375, %v374
          %v397 = vpack.c.b16 %v377, %v376
          %v398 = vpack.c.b16 %v379, %v378
          %v399 = vpack.c.b16 %v381, %v380
          %v401 = vunpack.c.l.b16 %v296
          %v402 = vpack.c.b16 %v401, %v401
          %vm403 = vsmask.f32 7424
          %v405 = vshrl.u32 %v382, 16
          %v407 = vshll.u32 %v382, 16
          %v409 = vrot.slane %v407, 1
          %v410 = vor.u32 %v405, %v409
          %v412 = vshll.u32 %v383, 16
          %v414 = vrot.slane %v412, 1
          %v415 = vsel %vm403, %v410, %v414
          %v416 = vshrl.u32 %v383, 16
          %v418 = vor.u32 %v416, %v414
          %v420 = vshll.u32 %v384, 16
          %v422 = vrot.slane %v420, 1
          %v423 = vsel %vm403, %v418, %v422
          %v424 = vshrl.u32 %v384, 16
          %v426 = vor.u32 %v424, %v422
          %v428 = vshll.u32 %v385, 16
          %v430 = vrot.slane %v428, 1
          %v431 = vsel %vm403, %v426, %v430
          %v432 = vshrl.u32 %v385, 16
          %v434 = vor.u32 %v432, %v430
          %v436 = vshll.u32 %v386, 16
          %v438 = vrot.slane %v436, 1
          %v439 = vsel %vm403, %v434, %v438
          %v440 = vshrl.u32 %v386, 16
          %v442 = vor.u32 %v440, %v438
          %v444 = vshll.u32 %v387, 16
          %v446 = vrot.slane %v444, 1
          %v447 = vsel %vm403, %v442, %v446
          %v448 = vshrl.u32 %v387, 16
          %v450 = vor.u32 %v448, %v446
          %v452 = vshll.u32 %v388, 16
          %v454 = vrot.slane %v452, 1
          %v455 = vsel %vm403, %v450, %v454
          %v456 = vshrl.u32 %v388, 16
          %v458 = vor.u32 %v456, %v454
          %v460 = vshll.u32 %v389, 16
          %v462 = vrot.slane %v460, 1
          %v463 = vsel %vm403, %v458, %v462
          %v464 = vshrl.u32 %v389, 16
          %v466 = vor.u32 %v464, %v462
          %v468 = vshll.u32 %v390, 16
          %v470 = vrot.slane %v468, 1
          %v471 = vsel %vm403, %v466, %v470
          %v472 = vshrl.u32 %v390, 16
          %v474 = vor.u32 %v472, %v470
          %v476 = vshll.u32 %v391, 16
          %v478 = vrot.slane %v476, 1
          %v479 = vsel %vm403, %v474, %v478
          %v480 = vshrl.u32 %v391, 16
          %v482 = vor.u32 %v480, %v478
          %v484 = vshll.u32 %v392, 16
          %v486 = vrot.slane %v484, 1
          %v487 = vsel %vm403, %v482, %v486
          %v488 = vshrl.u32 %v392, 16
          %v490 = vor.u32 %v488, %v486
          %v492 = vshll.u32 %v393, 16
          %v494 = vrot.slane %v492, 1
          %v495 = vsel %vm403, %v490, %v494
          %v496 = vshrl.u32 %v393, 16
          %v498 = vor.u32 %v496, %v494
          %v500 = vshll.u32 %v394, 16
          %v502 = vrot.slane %v500, 1
          %v503 = vsel %vm403, %v498, %v502
          %v504 = vshrl.u32 %v394, 16
          %v506 = vor.u32 %v504, %v502
          %v508 = vshll.u32 %v395, 16
          %v510 = vrot.slane %v508, 1
          %v511 = vsel %vm403, %v506, %v510
          %v512 = vshrl.u32 %v395, 16
          %v514 = vor.u32 %v512, %v510
          %v516 = vshll.u32 %v396, 16
          %v518 = vrot.slane %v516, 1
          %v519 = vsel %vm403, %v514, %v518
          %v520 = vshrl.u32 %v396, 16
          %v522 = vor.u32 %v520, %v518
          %v524 = vshll.u32 %v397, 16
          %v526 = vrot.slane %v524, 1
          %v527 = vsel %vm403, %v522, %v526
          %v528 = vshrl.u32 %v397, 16
          %v530 = vor.u32 %v528, %v526
          %v532 = vshll.u32 %v398, 16
          %v534 = vrot.slane %v532, 1
          %v535 = vsel %vm403, %v530, %v534
          %v536 = vshrl.u32 %v398, 16
          %v538 = vor.u32 %v536, %v534
          %v540 = vshll.u32 %v399, 16
          %v542 = vrot.slane %v540, 1
          %v543 = vsel %vm403, %v538, %v542
          %v544 = vshrl.u32 %v399, 16
          %v546 = vor.u32 %v544, %v542
          %v548 = vshll.u32 %v402, 16
          %v550 = vrot.slane %v548, 1
          %v551 = vsel %vm403, %v546, %v550
          %552 = vrot.lane.b32.xlu0 %v415, 4
          %v553 = vpop.permute.xlu0 %552
          %554 = vrot.lane.b32.xlu0 %v423, 4
          %v555 = vpop.permute.xlu0 %554
          %556 = vrot.lane.b32.xlu0 %v431, 4
          %v557 = vpop.permute.xlu0 %556
          %558 = vrot.lane.b32.xlu0 %v439, 4
          %v559 = vpop.permute.xlu0 %558
          %560 = vrot.lane.b32.xlu0 %v447, 4
          %v561 = vpop.permute.xlu0 %560
          %562 = vrot.lane.b32.xlu0 %v455, 4
          %v563 = vpop.permute.xlu0 %562
          %564 = vrot.lane.b32.xlu0 %v463, 4
          %v565 = vpop.permute.xlu0 %564
          %566 = vrot.lane.b32.xlu0 %v471, 4
          %v567 = vpop.permute.xlu0 %566
          %568 = vrot.lane.b32.xlu0 %v479, 4
          %v569 = vpop.permute.xlu0 %568
          %570 = vrot.lane.b32.xlu0 %v487, 4
          %v571 = vpop.permute.xlu0 %570
          %572 = vrot.lane.b32.xlu0 %v495, 4
          %v573 = vpop.permute.xlu0 %572
          %574 = vrot.lane.b32.xlu0 %v503, 4
          %v575 = vpop.permute.xlu0 %574
          %576 = vrot.lane.b32.xlu0 %v511, 4
          %v577 = vpop.permute.xlu0 %576
          %578 = vrot.lane.b32.xlu0 %v519, 4
          %v579 = vpop.permute.xlu0 %578
          %580 = vrot.lane.b32.xlu0 %v527, 4
          %v581 = vpop.permute.xlu0 %580
          %582 = vrot.lane.b32.xlu0 %v535, 4
          %v583 = vpop.permute.xlu0 %582
          %584 = vrot.lane.b32.xlu0 %v543, 4
          %v585 = vpop.permute.xlu0 %584
          %586 = vrot.lane.b32.xlu0 %v551, 4
          %v587 = vpop.permute.xlu0 %586
          %v589 = vunpack.c.l.b16 %v297
          %v590 = vpack.c.b16 %v347, %v589
          %vm591 = vcmask 1046528
          %v592 = vrot.slane %v590, 1
          %v593 = vrot.slane %v383, 1
          %v594 = vsel %vm591, %v592, %v593
          %v595 = vrot.slane %v384, 1
          %v596 = vsel %vm591, %v593, %v595
          %v597 = vrot.slane %v385, 1
          %v598 = vsel %vm591, %v595, %v597
          %v599 = vrot.slane %v386, 1
          %v600 = vsel %vm591, %v597, %v599
          %v601 = vrot.slane %v387, 1
          %v602 = vsel %vm591, %v599, %v601
          %v603 = vrot.slane %v388, 1
          %v604 = vsel %vm591, %v601, %v603
          %v605 = vrot.slane %v389, 1
          %v606 = vsel %vm591, %v603, %v605
          %v607 = vrot.slane %v390, 1
          %v608 = vsel %vm591, %v605, %v607
          %v609 = vrot.slane %v391, 1
          %v610 = vsel %vm591, %v607, %v609
          %v611 = vrot.slane %v392, 1
          %v612 = vsel %vm591, %v609, %v611
          %v613 = vrot.slane %v393, 1
          %v614 = vsel %vm591, %v611, %v613
          %v615 = vrot.slane %v394, 1
          %v616 = vsel %vm591, %v613, %v615
          %v617 = vrot.slane %v395, 1
          %v618 = vsel %vm591, %v615, %v617
          %v619 = vrot.slane %v396, 1
          %v620 = vsel %vm591, %v617, %v619
          %v621 = vrot.slane %v397, 1
          %v622 = vsel %vm591, %v619, %v621
          %v623 = vrot.slane %v398, 1
          %v624 = vsel %vm591, %v621, %v623
          %v625 = vrot.slane %v399, 1
          %v626 = vsel %vm591, %v623, %v625
          %v627 = vrot.slane %v402, 1
          %v628 = vsel %vm591, %v625, %v627
          %629 = vrot.lane.b32.xlu0 %v594, 8
          %v630 = vpop.permute.xlu0 %629
          %631 = vrot.lane.b32.xlu0 %v596, 8
          %v632 = vpop.permute.xlu0 %631
          %633 = vrot.lane.b32.xlu0 %v598, 8
          %v634 = vpop.permute.xlu0 %633
          %635 = vrot.lane.b32.xlu0 %v600, 8
          %v636 = vpop.permute.xlu0 %635
          %637 = vrot.lane.b32.xlu0 %v602, 8
          %v638 = vpop.permute.xlu0 %637
          %639 = vrot.lane.b32.xlu0 %v604, 8
          %v640 = vpop.permute.xlu0 %639
          %641 = vrot.lane.b32.xlu0 %v606, 8
          %v642 = vpop.permute.xlu0 %641
          %643 = vrot.lane.b32.xlu0 %v608, 8
          %v644 = vpop.permute.xlu0 %643
          %645 = vrot.lane.b32.xlu0 %v610, 8
          %v646 = vpop.permute.xlu0 %645
          %647 = vrot.lane.b32.xlu0 %v612, 8
          %v648 = vpop.permute.xlu0 %647
          %649 = vrot.lane.b32.xlu0 %v614, 8
          %v650 = vpop.permute.xlu0 %649
          %651 = vrot.lane.b32.xlu0 %v616, 8
          %v652 = vpop.permute.xlu0 %651
          %653 = vrot.lane.b32.xlu0 %v618, 8
          %v654 = vpop.permute.xlu0 %653
          %655 = vrot.lane.b32.xlu0 %v620, 8
          %v656 = vpop.permute.xlu0 %655
          %657 = vrot.lane.b32.xlu0 %v622, 8
          %v658 = vpop.permute.xlu0 %657
          %659 = vrot.lane.b32.xlu0 %v624, 8
          %v660 = vpop.permute.xlu0 %659
          %661 = vrot.lane.b32.xlu0 %v626, 8
          %v662 = vpop.permute.xlu0 %661
          %663 = vrot.lane.b32.xlu0 %v628, 8
          %v664 = vpop.permute.xlu0 %663
          %v669 = vunpack.c.l.b16 %v298
          %v670 = vunpack.c.l.b16 %v299
          %v671 = vunpack.c.l.b16 %v300
          %v672 = vunpack.c.l.b16 %v301
          %v673 = vpack.c.b16 %v349, %v669
          %v674 = vpack.c.b16 %v671, %v670
          %v675 = vpack.c.b16 %v672, %v672
          %v676 = vrot.slane %v673, 1
          %v677 = vsel %vm591, %v676, %v595
          %v678 = vrot.slane %v674, 1
          %v679 = vsel %vm591, %v625, %v678
          %v680 = vrot.slane %v675, 1
          %v681 = vsel %vm591, %v678, %v680
          %682 = vrot.lane.b32.xlu0 %v677, 12
          %v683 = vpop.permute.xlu0 %682
          %684 = vrot.lane.b32.xlu0 %v598, 12
          %v685 = vpop.permute.xlu0 %684
          %686 = vrot.lane.b32.xlu0 %v600, 12
          %v687 = vpop.permute.xlu0 %686
          %688 = vrot.lane.b32.xlu0 %v602, 12
          %v689 = vpop.permute.xlu0 %688
          %690 = vrot.lane.b32.xlu0 %v604, 12
          %v691 = vpop.permute.xlu0 %690
          %692 = vrot.lane.b32.xlu0 %v606, 12
          %v693 = vpop.permute.xlu0 %692
          %694 = vrot.lane.b32.xlu0 %v608, 12
          %v695 = vpop.permute.xlu0 %694
          %696 = vrot.lane.b32.xlu0 %v610, 12
          %v697 = vpop.permute.xlu0 %696
          %698 = vrot.lane.b32.xlu0 %v612, 12
          %v699 = vpop.permute.xlu0 %698
          %700 = vrot.lane.b32.xlu0 %v614, 12
          %v701 = vpop.permute.xlu0 %700
          %702 = vrot.lane.b32.xlu0 %v616, 12
          %v703 = vpop.permute.xlu0 %702
          %704 = vrot.lane.b32.xlu0 %v618, 12
          %v705 = vpop.permute.xlu0 %704
          %706 = vrot.lane.b32.xlu0 %v620, 12
          %v707 = vpop.permute.xlu0 %706
          %708 = vrot.lane.b32.xlu0 %v622, 12
          %v709 = vpop.permute.xlu0 %708
          %710 = vrot.lane.b32.xlu0 %v624, 12
          %v711 = vpop.permute.xlu0 %710
          %712 = vrot.lane.b32.xlu0 %v626, 12
          %v713 = vpop.permute.xlu0 %712
          %714 = vrot.lane.b32.xlu0 %v679, 12
          %v715 = vpop.permute.xlu0 %714
          %716 = vrot.lane.b32.xlu0 %v681, 12
          %v717 = vpop.permute.xlu0 %716
          %v719 = vunpack.c.l.b16 %v302
          %v720 = vpack.c.b16 %v719, %v719
          %vm721 = vsmask.f32 6400
          %v723 = vshrl.u32 %v673, 16
          %v725 = vrot.slane %v723, 1
          %v726 = vshll.u32 %v673, 16
          %v728 = vrot.slane %v726, 2
          %v729 = vor.u32 %v725, %v728
          %v730 = vrot.slane %v424, 1
          %v731 = vrot.slane %v420, 2
          %v732 = vor.u32 %v730, %v731
          %v733 = vsel %vm721, %v729, %v732
          %v734 = vrot.slane %v432, 1
          %v735 = vrot.slane %v428, 2
          %v736 = vor.u32 %v734, %v735
          %v737 = vsel %vm721, %v732, %v736
          %v738 = vrot.slane %v440, 1
          %v739 = vrot.slane %v436, 2
          %v740 = vor.u32 %v738, %v739
          %v741 = vsel %vm721, %v736, %v740
          %v742 = vrot.slane %v448, 1
          %v743 = vrot.slane %v444, 2
          %v744 = vor.u32 %v742, %v743
          %v745 = vsel %vm721, %v740, %v744
          %v746 = vrot.slane %v456, 1
          %v747 = vrot.slane %v452, 2
          %v748 = vor.u32 %v746, %v747
          %v749 = vsel %vm721, %v744, %v748
          %v750 = vrot.slane %v464, 1
          %v751 = vrot.slane %v460, 2
          %v752 = vor.u32 %v750, %v751
          %v753 = vsel %vm721, %v748, %v752
          %v754 = vrot.slane %v472, 1
          %v755 = vrot.slane %v468, 2
          %v756 = vor.u32 %v754, %v755
          %v757 = vsel %vm721, %v752, %v756
          %v758 = vrot.slane %v480, 1
          %v759 = vrot.slane %v476, 2
          %v760 = vor.u32 %v758, %v759
          %v761 = vsel %vm721, %v756, %v760
          %v762 = vrot.slane %v488, 1
          %v763 = vrot.slane %v484, 2
          %v764 = vor.u32 %v762, %v763
          %v765 = vsel %vm721, %v760, %v764
          %v766 = vrot.slane %v496, 1
          %v767 = vrot.slane %v492, 2
          %v768 = vor.u32 %v766, %v767
          %v769 = vsel %vm721, %v764, %v768
          %v770 = vrot.slane %v504, 1
          %v771 = vrot.slane %v500, 2
          %v772 = vor.u32 %v770, %v771
          %v773 = vsel %vm721, %v768, %v772
          %v774 = vrot.slane %v512, 1
          %v775 = vrot.slane %v508, 2
          %v776 = vor.u32 %v774, %v775
          %v777 = vsel %vm721, %v772, %v776
          %v778 = vrot.slane %v520, 1
          %v779 = vrot.slane %v516, 2
          %v780 = vor.u32 %v778, %v779
          %v781 = vsel %vm721, %v776, %v780
          %v782 = vrot.slane %v528, 1
          %v783 = vrot.slane %v524, 2
          %v784 = vor.u32 %v782, %v783
          %v785 = vsel %vm721, %v780, %v784
          %v786 = vrot.slane %v536, 1
          %v787 = vrot.slane %v532, 2
          %v788 = vor.u32 %v786, %v787
          %v789 = vsel %vm721, %v784, %v788
          %v790 = vrot.slane %v544, 1
          %v791 = vrot.slane %v540, 2
          %v792 = vor.u32 %v790, %v791
          %v793 = vsel %vm721, %v788, %v792
          %v795 = vshrl.u32 %v674, 16
          %v797 = vrot.slane %v795, 1
          %v798 = vshll.u32 %v674, 16
          %v800 = vrot.slane %v798, 2
          %v801 = vor.u32 %v797, %v800
          %v802 = vsel %vm721, %v792, %v801
          %v804 = vshrl.u32 %v720, 16
          %v806 = vrot.slane %v804, 1
          %v807 = vshll.u32 %v720, 16
          %v809 = vrot.slane %v807, 2
          %v810 = vor.u32 %v806, %v809
          %v811 = vsel %vm721, %v801, %v810
          %812 = vrot.lane.b32.xlu0 %v733, 16
          %v813 = vpop.permute.xlu0 %812
          %814 = vrot.lane.b32.xlu0 %v737, 16
          %v815 = vpop.permute.xlu0 %814
          %816 = vrot.lane.b32.xlu0 %v741, 16
          %v817 = vpop.permute.xlu0 %816
          %818 = vrot.lane.b32.xlu0 %v745, 16
          %v819 = vpop.permute.xlu0 %818
          %820 = vrot.lane.b32.xlu0 %v749, 16
          %v821 = vpop.permute.xlu0 %820
          %822 = vrot.lane.b32.xlu0 %v753, 16
          %v823 = vpop.permute.xlu0 %822
          %824 = vrot.lane.b32.xlu0 %v757, 16
          %v825 = vpop.permute.xlu0 %824
          %826 = vrot.lane.b32.xlu0 %v761, 16
          %v827 = vpop.permute.xlu0 %826
          %828 = vrot.lane.b32.xlu0 %v765, 16
          %v829 = vpop.permute.xlu0 %828
          %830 = vrot.lane.b32.xlu0 %v769, 16
          %v831 = vpop.permute.xlu0 %830
          %832 = vrot.lane.b32.xlu0 %v773, 16
          %v833 = vpop.permute.xlu0 %832
          %834 = vrot.lane.b32.xlu0 %v777, 16
          %v835 = vpop.permute.xlu0 %834
          %836 = vrot.lane.b32.xlu0 %v781, 16
          %v837 = vpop.permute.xlu0 %836
          %838 = vrot.lane.b32.xlu0 %v785, 16
          %v839 = vpop.permute.xlu0 %838
          %840 = vrot.lane.b32.xlu0 %v789, 16
          %v841 = vpop.permute.xlu0 %840
          %842 = vrot.lane.b32.xlu0 %v793, 16
          %v843 = vpop.permute.xlu0 %842
          %844 = vrot.lane.b32.xlu0 %v802, 16
          %v845 = vpop.permute.xlu0 %844
          %846 = vrot.lane.b32.xlu0 %v811, 16
          %v847 = vpop.permute.xlu0 %846
          %v849 = vunpack.c.l.b16 %v303
          %v850 = vpack.c.b16 %v349, %v849
          %vm851 = vcmask 1045504
          %v852 = vrot.slane %v850, 2
          %v853 = vrot.slane %v384, 2
          %v854 = vsel %vm851, %v852, %v853
          %v855 = vrot.slane %v385, 2
          %v856 = vsel %vm851, %v853, %v855
          %v857 = vrot.slane %v386, 2
          %v858 = vsel %vm851, %v855, %v857
          %v859 = vrot.slane %v387, 2
          %v860 = vsel %vm851, %v857, %v859
          %v861 = vrot.slane %v388, 2
          %v862 = vsel %vm851, %v859, %v861
          %v863 = vrot.slane %v389, 2
          %v864 = vsel %vm851, %v861, %v863
          %v865 = vrot.slane %v390, 2
          %v866 = vsel %vm851, %v863, %v865
          %v867 = vrot.slane %v391, 2
          %v868 = vsel %vm851, %v865, %v867
          %v869 = vrot.slane %v392, 2
          %v870 = vsel %vm851, %v867, %v869
          %v871 = vrot.slane %v393, 2
          %v872 = vsel %vm851, %v869, %v871
          %v873 = vrot.slane %v394, 2
          %v874 = vsel %vm851, %v871, %v873
          %v875 = vrot.slane %v395, 2
          %v876 = vsel %vm851, %v873, %v875
          %v877 = vrot.slane %v396, 2
          %v878 = vsel %vm851, %v875, %v877
          %v879 = vrot.slane %v397, 2
          %v880 = vsel %vm851, %v877, %v879
          %v881 = vrot.slane %v398, 2
          %v882 = vsel %vm851, %v879, %v881
          %v883 = vrot.slane %v399, 2
          %v884 = vsel %vm851, %v881, %v883
          %v885 = vrot.slane %v674, 2
          %v886 = vsel %vm851, %v883, %v885
          %v887 = vrot.slane %v720, 2
          %v888 = vsel %vm851, %v885, %v887
          %889 = vrot.lane.b32.xlu0 %v854, 20
          %v890 = vpop.permute.xlu0 %889
          %891 = vrot.lane.b32.xlu0 %v856, 20
          %v892 = vpop.permute.xlu0 %891
          %893 = vrot.lane.b32.xlu0 %v858, 20
          %v894 = vpop.permute.xlu0 %893
          %895 = vrot.lane.b32.xlu0 %v860, 20
          %v896 = vpop.permute.xlu0 %895
          %897 = vrot.lane.b32.xlu0 %v862, 20
          %v898 = vpop.permute.xlu0 %897
          %899 = vrot.lane.b32.xlu0 %v864, 20
          %v900 = vpop.permute.xlu0 %899
          %901 = vrot.lane.b32.xlu0 %v866, 20
          %v902 = vpop.permute.xlu0 %901
          %903 = vrot.lane.b32.xlu0 %v868, 20
          %v904 = vpop.permute.xlu0 %903
          %905 = vrot.lane.b32.xlu0 %v870, 20
          %v906 = vpop.permute.xlu0 %905
          %907 = vrot.lane.b32.xlu0 %v872, 20
          %v908 = vpop.permute.xlu0 %907
          %909 = vrot.lane.b32.xlu0 %v874, 20
          %v910 = vpop.permute.xlu0 %909
          %911 = vrot.lane.b32.xlu0 %v876, 20
          %v912 = vpop.permute.xlu0 %911
          %913 = vrot.lane.b32.xlu0 %v878, 20
          %v914 = vpop.permute.xlu0 %913
          %915 = vrot.lane.b32.xlu0 %v880, 20
          %v916 = vpop.permute.xlu0 %915
          %917 = vrot.lane.b32.xlu0 %v882, 20
          %v918 = vpop.permute.xlu0 %917
          %919 = vrot.lane.b32.xlu0 %v884, 20
          %v920 = vpop.permute.xlu0 %919
          %921 = vrot.lane.b32.xlu0 %v886, 20
          %v922 = vpop.permute.xlu0 %921
          %923 = vrot.lane.b32.xlu0 %v888, 20
          %v924 = vpop.permute.xlu0 %923
          %v929 = vunpack.c.l.b16 %v304
          %v930 = vunpack.c.l.b16 %v305
          %v931 = vunpack.c.l.b16 %v306
          %v932 = vunpack.c.l.b16 %v307
          %v933 = vpack.c.b16 %v351, %v929
          %v934 = vpack.c.b16 %v931, %v930
          %v935 = vpack.c.b16 %v932, %v932
          %v936 = vrot.slane %v933, 2
          %v937 = vsel %vm851, %v936, %v855
          %v938 = vrot.slane %v934, 2
          %v939 = vsel %vm851, %v885, %v938
          %v940 = vrot.slane %v935, 2
          %v941 = vsel %vm851, %v938, %v940
          %942 = vrot.lane.b32.xlu0 %v937, 24
          %v943 = vpop.permute.xlu0 %942
          %944 = vrot.lane.b32.xlu0 %v858, 24
          %v945 = vpop.permute.xlu0 %944
          %946 = vrot.lane.b32.xlu0 %v860, 24
          %v947 = vpop.permute.xlu0 %946
          %948 = vrot.lane.b32.xlu0 %v862, 24
          %v949 = vpop.permute.xlu0 %948
          %950 = vrot.lane.b32.xlu0 %v864, 24
          %v951 = vpop.permute.xlu0 %950
          %952 = vrot.lane.b32.xlu0 %v866, 24
          %v953 = vpop.permute.xlu0 %952
          %954 = vrot.lane.b32.xlu0 %v868, 24
          %v955 = vpop.permute.xlu0 %954
          %956 = vrot.lane.b32.xlu0 %v870, 24
          %v957 = vpop.permute.xlu0 %956
          %958 = vrot.lane.b32.xlu0 %v872, 24
          %v959 = vpop.permute.xlu0 %958
          %960 = vrot.lane.b32.xlu0 %v874, 24
          %v961 = vpop.permute.xlu0 %960
          %962 = vrot.lane.b32.xlu0 %v876, 24
          %v963 = vpop.permute.xlu0 %962
          %964 = vrot.lane.b32.xlu0 %v878, 24
          %v965 = vpop.permute.xlu0 %964
          %966 = vrot.lane.b32.xlu0 %v880, 24
          %v967 = vpop.permute.xlu0 %966
          %968 = vrot.lane.b32.xlu0 %v882, 24
          %v969 = vpop.permute.xlu0 %968
          %970 = vrot.lane.b32.xlu0 %v884, 24
          %v971 = vpop.permute.xlu0 %970
          %972 = vrot.lane.b32.xlu0 %v886, 24
          %v973 = vpop.permute.xlu0 %972
          %974 = vrot.lane.b32.xlu0 %v939, 24
          %v975 = vpop.permute.xlu0 %974
          %976 = vrot.lane.b32.xlu0 %v941, 24
          %v977 = vpop.permute.xlu0 %976
          %v979 = vunpack.c.l.b16 %v308
          %v980 = vpack.c.b16 %v979, %v979
          %vm981 = vsmask.f32 5376
          %v983 = vshrl.u32 %v933, 16
          %v985 = vrot.slane %v983, 2
          %v986 = vshll.u32 %v933, 16
          %v988 = vrot.slane %v986, 3
          %v989 = vor.u32 %v985, %v988
          %v990 = vrot.slane %v432, 2
          %v991 = vrot.slane %v428, 3
          %v992 = vor.u32 %v990, %v991
          %v993 = vsel %vm981, %v989, %v992
          %v994 = vrot.slane %v440, 2
          %v995 = vrot.slane %v436, 3
          %v996 = vor.u32 %v994, %v995
          %v997 = vsel %vm981, %v992, %v996
          %v998 = vrot.slane %v448, 2
          %v999 = vrot.slane %v444, 3
          %v1000 = vor.u32 %v998, %v999
          %v1001 = vsel %vm981, %v996, %v1000
          %v1002 = vrot.slane %v456, 2
          %v1003 = vrot.slane %v452, 3
          %v1004 = vor.u32 %v1002, %v1003
          %v1005 = vsel %vm981, %v1000, %v1004
          %v1006 = vrot.slane %v464, 2
          %v1007 = vrot.slane %v460, 3
          %v1008 = vor.u32 %v1006, %v1007
          %v1009 = vsel %vm981, %v1004, %v1008
          %v1010 = vrot.slane %v472, 2
          %v1011 = vrot.slane %v468, 3
          %v1012 = vor.u32 %v1010, %v1011
          %v1013 = vsel %vm981, %v1008, %v1012
          %v1014 = vrot.slane %v480, 2
          %v1015 = vrot.slane %v476, 3
          %v1016 = vor.u32 %v1014, %v1015
          %v1017 = vsel %vm981, %v1012, %v1016
          %v1018 = vrot.slane %v488, 2
          %v1019 = vrot.slane %v484, 3
          %v1020 = vor.u32 %v1018, %v1019
          %v1021 = vsel %vm981, %v1016, %v1020
          %v1022 = vrot.slane %v496, 2
          %v1023 = vrot.slane %v492, 3
          %v1024 = vor.u32 %v1022, %v1023
          %v1025 = vsel %vm981, %v1020, %v1024
          %v1026 = vrot.slane %v504, 2
          %v1027 = vrot.slane %v500, 3
          %v1028 = vor.u32 %v1026, %v1027
          %v1029 = vsel %vm981, %v1024, %v1028
          %v1030 = vrot.slane %v512, 2
          %v1031 = vrot.slane %v508, 3
          %v1032 = vor.u32 %v1030, %v1031
          %v1033 = vsel %vm981, %v1028, %v1032
          %v1034 = vrot.slane %v520, 2
          %v1035 = vrot.slane %v516, 3
          %v1036 = vor.u32 %v1034, %v1035
          %v1037 = vsel %vm981, %v1032, %v1036
          %v1038 = vrot.slane %v528, 2
          %v1039 = vrot.slane %v524, 3
          %v1040 = vor.u32 %v1038, %v1039
          %v1041 = vsel %vm981, %v1036, %v1040
          %v1042 = vrot.slane %v536, 2
          %v1043 = vrot.slane %v532, 3
          %v1044 = vor.u32 %v1042, %v1043
          %v1045 = vsel %vm981, %v1040, %v1044
          %v1046 = vrot.slane %v544, 2
          %v1047 = vrot.slane %v540, 3
          %v1048 = vor.u32 %v1046, %v1047
          %v1049 = vsel %vm981, %v1044, %v1048
          %v1050 = vrot.slane %v795, 2
          %v1051 = vrot.slane %v798, 3
          %v1052 = vor.u32 %v1050, %v1051
          %v1053 = vsel %vm981, %v1048, %v1052
          %v1055 = vshrl.u32 %v934, 16
          %v1057 = vrot.slane %v1055, 2
          %v1058 = vshll.u32 %v934, 16
          %v1060 = vrot.slane %v1058, 3
          %v1061 = vor.u32 %v1057, %v1060
          %v1062 = vsel %vm981, %v1052, %v1061
          %v1064 = vshrl.u32 %v980, 16
          %v1066 = vrot.slane %v1064, 2
          %v1067 = vshll.u32 %v980, 16
          %v1069 = vrot.slane %v1067, 3
          %v1070 = vor.u32 %v1066, %v1069
          %v1071 = vsel %vm981, %v1061, %v1070
          %1072 = vrot.lane.b32.xlu0 %v993, 28
          %v1073 = vpop.permute.xlu0 %1072
          %1074 = vrot.lane.b32.xlu0 %v997, 28
          %v1075 = vpop.permute.xlu0 %1074
          %1076 = vrot.lane.b32.xlu0 %v1001, 28
          %v1077 = vpop.permute.xlu0 %1076
          %1078 = vrot.lane.b32.xlu0 %v1005, 28
          %v1079 = vpop.permute.xlu0 %1078
          %1080 = vrot.lane.b32.xlu0 %v1009, 28
          %v1081 = vpop.permute.xlu0 %1080
          %1082 = vrot.lane.b32.xlu0 %v1013, 28
          %v1083 = vpop.permute.xlu0 %1082
          %1084 = vrot.lane.b32.xlu0 %v1017, 28
          %v1085 = vpop.permute.xlu0 %1084
          %1086 = vrot.lane.b32.xlu0 %v1021, 28
          %v1087 = vpop.permute.xlu0 %1086
          %1088 = vrot.lane.b32.xlu0 %v1025, 28
          %v1089 = vpop.permute.xlu0 %1088
          %1090 = vrot.lane.b32.xlu0 %v1029, 28
          %v1091 = vpop.permute.xlu0 %1090
          %1092 = vrot.lane.b32.xlu0 %v1033, 28
          %v1093 = vpop.permute.xlu0 %1092
          %1094 = vrot.lane.b32.xlu0 %v1037, 28
          %v1095 = vpop.permute.xlu0 %1094
          %1096 = vrot.lane.b32.xlu0 %v1041, 28
          %v1097 = vpop.permute.xlu0 %1096
          %1098 = vrot.lane.b32.xlu0 %v1045, 28
          %v1099 = vpop.permute.xlu0 %1098
          %1100 = vrot.lane.b32.xlu0 %v1049, 28
          %v1101 = vpop.permute.xlu0 %1100
          %1102 = vrot.lane.b32.xlu0 %v1053, 28
          %v1103 = vpop.permute.xlu0 %1102
          %1104 = vrot.lane.b32.xlu0 %v1062, 28
          %v1105 = vpop.permute.xlu0 %1104
          %1106 = vrot.lane.b32.xlu0 %v1071, 28
          %v1107 = vpop.permute.xlu0 %1106
          %v1109 = vunpack.c.l.b16 %v309
          %v1110 = vpack.c.b16 %v351, %v1109
          %vm1111 = vcmask 1044480
          %v1112 = vrot.slane %v1110, 3
          %v1113 = vrot.slane %v385, 3
          %v1114 = vsel %vm1111, %v1112, %v1113
          %v1115 = vrot.slane %v386, 3
          %v1116 = vsel %vm1111, %v1113, %v1115
          %v1117 = vrot.slane %v387, 3
          %v1118 = vsel %vm1111, %v1115, %v1117
          %v1119 = vrot.slane %v388, 3
          %v1120 = vsel %vm1111, %v1117, %v1119
          %v1121 = vrot.slane %v389, 3
          %v1122 = vsel %vm1111, %v1119, %v1121
          %v1123 = vrot.slane %v390, 3
          %v1124 = vsel %vm1111, %v1121, %v1123
          %v1125 = vrot.slane %v391, 3
          %v1126 = vsel %vm1111, %v1123, %v1125
          %v1127 = vrot.slane %v392, 3
          %v1128 = vsel %vm1111, %v1125, %v1127
          %v1129 = vrot.slane %v393, 3
          %v1130 = vsel %vm1111, %v1127, %v1129
          %v1131 = vrot.slane %v394, 3
          %v1132 = vsel %vm1111, %v1129, %v1131
          %v1133 = vrot.slane %v395, 3
          %v1134 = vsel %vm1111, %v1131, %v1133
          %v1135 = vrot.slane %v396, 3
          %v1136 = vsel %vm1111, %v1133, %v1135
          %v1137 = vrot.slane %v397, 3
          %v1138 = vsel %vm1111, %v1135, %v1137
          %v1139 = vrot.slane %v398, 3
          %v1140 = vsel %vm1111, %v1137, %v1139
          %v1141 = vrot.slane %v399, 3
          %v1142 = vsel %vm1111, %v1139, %v1141
          %v1143 = vrot.slane %v674, 3
          %v1144 = vsel %vm1111, %v1141, %v1143
          %v1145 = vrot.slane %v934, 3
          %v1146 = vsel %vm1111, %v1143, %v1145
          %v1147 = vrot.slane %v980, 3
          %v1148 = vsel %vm1111, %v1145, %v1147
          %1149 = vrot.lane.b32.xlu0 %v1114, 32
          %v1150 = vpop.permute.xlu0 %1149
          %1151 = vrot.lane.b32.xlu0 %v1116, 32
          %v1152 = vpop.permute.xlu0 %1151
          %1153 = vrot.lane.b32.xlu0 %v1118, 32
          %v1154 = vpop.permute.xlu0 %1153
          %1155 = vrot.lane.b32.xlu0 %v1120, 32
          %v1156 = vpop.permute.xlu0 %1155
          %1157 = vrot.lane.b32.xlu0 %v1122, 32
          %v1158 = vpop.permute.xlu0 %1157
          %1159 = vrot.lane.b32.xlu0 %v1124, 32
          %v1160 = vpop.permute.xlu0 %1159
          %1161 = vrot.lane.b32.xlu0 %v1126, 32
          %v1162 = vpop.permute.xlu0 %1161
          %1163 = vrot.lane.b32.xlu0 %v1128, 32
          %v1164 = vpop.permute.xlu0 %1163
          %1165 = vrot.lane.b32.xlu0 %v1130, 32
          %v1166 = vpop.permute.xlu0 %1165
          %1167 = vrot.lane.b32.xlu0 %v1132, 32
          %v1168 = vpop.permute.xlu0 %1167
          %1169 = vrot.lane.b32.xlu0 %v1134, 32
          %v1170 = vpop.permute.xlu0 %1169
          %1171 = vrot.lane.b32.xlu0 %v1136, 32
          %v1172 = vpop.permute.xlu0 %1171
          %1173 = vrot.lane.b32.xlu0 %v1138, 32
          %v1174 = vpop.permute.xlu0 %1173
          %1175 = vrot.lane.b32.xlu0 %v1140, 32
          %v1176 = vpop.permute.xlu0 %1175
          %1177 = vrot.lane.b32.xlu0 %v1142, 32
          %v1178 = vpop.permute.xlu0 %1177
          %1179 = vrot.lane.b32.xlu0 %v1144, 32
          %v1180 = vpop.permute.xlu0 %1179
          %1181 = vrot.lane.b32.xlu0 %v1146, 32
          %v1182 = vpop.permute.xlu0 %1181
          %1183 = vrot.lane.b32.xlu0 %v1148, 32
          %v1184 = vpop.permute.xlu0 %1183
          %vm1185 = vcmask 31744
          %v1187 = vsel %vm1185, %v382, %v553
          %v1189 = vsel %vm1185, %v383, %v555
          %v1191 = vsel %vm1185, %v384, %v557
          %v1193 = vsel %vm1185, %v385, %v559
          %v1195 = vsel %vm1185, %v386, %v561
          %v1197 = vsel %vm1185, %v387, %v563
          %v1199 = vsel %vm1185, %v388, %v565
          %v1201 = vsel %vm1185, %v389, %v567
          %v1203 = vsel %vm1185, %v390, %v569
          %v1205 = vsel %vm1185, %v391, %v571
          %v1207 = vsel %vm1185, %v392, %v573
          %v1209 = vsel %vm1185, %v393, %v575
          %v1211 = vsel %vm1185, %v394, %v577
          %v1213 = vsel %vm1185, %v395, %v579
          %v1215 = vsel %vm1185, %v396, %v581
          %v1217 = vsel %vm1185, %v397, %v583
          %v1219 = vsel %vm1185, %v398, %v585
          %v1221 = vsel %vm1185, %v399, %v587
          %vm1222 = vcmask 64512
          %v1224 = vsel %vm1222, %v1187, %v630
          %v1226 = vsel %vm1222, %v1189, %v632
          %v1228 = vsel %vm1222, %v1191, %v634
          %v1230 = vsel %vm1222, %v1193, %v636
          %v1232 = vsel %vm1222, %v1195, %v638
          %v1234 = vsel %vm1222, %v1197, %v640
          %v1236 = vsel %vm1222, %v1199, %v642
          %v1238 = vsel %vm1222, %v1201, %v644
          %v1240 = vsel %vm1222, %v1203, %v646
          %v1242 = vsel %vm1222, %v1205, %v648
          %v1244 = vsel %vm1222, %v1207, %v650
          %v1246 = vsel %vm1222, %v1209, %v652
          %v1248 = vsel %vm1222, %v1211, %v654
          %v1250 = vsel %vm1222, %v1213, %v656
          %v1252 = vsel %vm1222, %v1215, %v658
          %v1254 = vsel %vm1222, %v1217, %v660
          %v1256 = vsel %vm1222, %v1219, %v662
          %v1258 = vsel %vm1222, %v1221, %v664
          %vm1259 = vcmask 97280
          %v1261 = vsel %vm1259, %v1224, %v683
          %v1263 = vsel %vm1259, %v1226, %v685
          %v1265 = vsel %vm1259, %v1228, %v687
          %v1267 = vsel %vm1259, %v1230, %v689
          %v1269 = vsel %vm1259, %v1232, %v691
          %v1271 = vsel %vm1259, %v1234, %v693
          %v1273 = vsel %vm1259, %v1236, %v695
          %v1275 = vsel %vm1259, %v1238, %v697
          %v1277 = vsel %vm1259, %v1240, %v699
          %v1279 = vsel %vm1259, %v1242, %v701
          %v1281 = vsel %vm1259, %v1244, %v703
          %v1283 = vsel %vm1259, %v1246, %v705
          %v1285 = vsel %vm1259, %v1248, %v707
          %v1287 = vsel %vm1259, %v1250, %v709
          %v1289 = vsel %vm1259, %v1252, %v711
          %v1291 = vsel %vm1259, %v1254, %v713
          %v1293 = vsel %vm1259, %v1256, %v715
          %v1295 = vsel %vm1259, %v1258, %v717
          %vm1296 = vcmask 130048
          %v1298 = vsel %vm1296, %v1261, %v813
          %v1300 = vsel %vm1296, %v1263, %v815
          %v1302 = vsel %vm1296, %v1265, %v817
          %v1304 = vsel %vm1296, %v1267, %v819
          %v1306 = vsel %vm1296, %v1269, %v821
          %v1308 = vsel %vm1296, %v1271, %v823
          %v1310 = vsel %vm1296, %v1273, %v825
          %v1312 = vsel %vm1296, %v1275, %v827
          %v1314 = vsel %vm1296, %v1277, %v829
          %v1316 = vsel %vm1296, %v1279, %v831
          %v1318 = vsel %vm1296, %v1281, %v833
          %v1320 = vsel %vm1296, %v1283, %v835
          %v1322 = vsel %vm1296, %v1285, %v837
          %v1324 = vsel %vm1296, %v1287, %v839
          %v1326 = vsel %vm1296, %v1289, %v841
          %v1328 = vsel %vm1296, %v1291, %v843
          %v1330 = vsel %vm1296, %v1293, %v845
          %v1332 = vsel %vm1296, %v1295, %v847
          %vm1333 = vcmask 162816
          %v1335 = vsel %vm1333, %v1298, %v890
          %v1337 = vsel %vm1333, %v1300, %v892
          %v1339 = vsel %vm1333, %v1302, %v894
          %v1341 = vsel %vm1333, %v1304, %v896
          %v1343 = vsel %vm1333, %v1306, %v898
          %v1345 = vsel %vm1333, %v1308, %v900
          %v1347 = vsel %vm1333, %v1310, %v902
          %v1349 = vsel %vm1333, %v1312, %v904
          %v1351 = vsel %vm1333, %v1314, %v906
          %v1353 = vsel %vm1333, %v1316, %v908
          %v1355 = vsel %vm1333, %v1318, %v910
          %v1357 = vsel %vm1333, %v1320, %v912
          %v1359 = vsel %vm1333, %v1322, %v914
          %v1361 = vsel %vm1333, %v1324, %v916
          %v1363 = vsel %vm1333, %v1326, %v918
          %v1365 = vsel %vm1333, %v1328, %v920
          %v1367 = vsel %vm1333, %v1330, %v922
          %v1369 = vsel %vm1333, %v1332, %v924
          %vm1370 = vcmask 195584
          %v1372 = vsel %vm1370, %v1335, %v943
          %v1374 = vsel %vm1370, %v1337, %v945
          %v1376 = vsel %vm1370, %v1339, %v947
          %v1378 = vsel %vm1370, %v1341, %v949
          %v1380 = vsel %vm1370, %v1343, %v951
          %v1382 = vsel %vm1370, %v1345, %v953
          %v1384 = vsel %vm1370, %v1347, %v955
          %v1386 = vsel %vm1370, %v1349, %v957
          %v1388 = vsel %vm1370, %v1351, %v959
          %v1390 = vsel %vm1370, %v1353, %v961
          %v1392 = vsel %vm1370, %v1355, %v963
          %v1394 = vsel %vm1370, %v1357, %v965
          %v1396 = vsel %vm1370, %v1359, %v967
          %v1398 = vsel %vm1370, %v1361, %v969
          %v1400 = vsel %vm1370, %v1363, %v971
          %v1402 = vsel %vm1370, %v1365, %v973
          %v1404 = vsel %vm1370, %v1367, %v975
          %v1406 = vsel %vm1370, %v1369, %v977
          %vm1407 = vcmask 228352
          %v1409 = vsel %vm1407, %v1372, %v1073
          %v1411 = vsel %vm1407, %v1374, %v1075
          %v1413 = vsel %vm1407, %v1376, %v1077
          %v1415 = vsel %vm1407, %v1378, %v1079
          %v1417 = vsel %vm1407, %v1380, %v1081
          %v1419 = vsel %vm1407, %v1382, %v1083
          %v1421 = vsel %vm1407, %v1384, %v1085
          %v1423 = vsel %vm1407, %v1386, %v1087
          %v1425 = vsel %vm1407, %v1388, %v1089
          %v1427 = vsel %vm1407, %v1390, %v1091
          %v1429 = vsel %vm1407, %v1392, %v1093
          %v1431 = vsel %vm1407, %v1394, %v1095
          %v1433 = vsel %vm1407, %v1396, %v1097
          %v1435 = vsel %vm1407, %v1398, %v1099
          %v1437 = vsel %vm1407, %v1400, %v1101
          %v1439 = vsel %vm1407, %v1402, %v1103
          %v1441 = vsel %vm1407, %v1404, %v1105
          %v1443 = vsel %vm1407, %v1406, %v1107
          %vm1444 = vcmask 261120
          %v1446 = vsel %vm1444, %v1409, %v1150
          %v1448 = vsel %vm1444, %v1411, %v1152
          %v1450 = vsel %vm1444, %v1413, %v1154
          %v1452 = vsel %vm1444, %v1415, %v1156
          %v1454 = vsel %vm1444, %v1417, %v1158
          %v1456 = vsel %vm1444, %v1419, %v1160
          %v1458 = vsel %vm1444, %v1421, %v1162
          %v1460 = vsel %vm1444, %v1423, %v1164
          %v1462 = vsel %vm1444, %v1425, %v1166
          %v1464 = vsel %vm1444, %v1427, %v1168
          %v1466 = vsel %vm1444, %v1429, %v1170
          %v1468 = vsel %vm1444, %v1431, %v1172
          %v1470 = vsel %vm1444, %v1433, %v1174
          %v1472 = vsel %vm1444, %v1435, %v1176
          %v1474 = vsel %vm1444, %v1437, %v1178
          %v1476 = vsel %vm1444, %v1439, %v1180
          %v1478 = vsel %vm1444, %v1441, %v1182
          %v1480 = vsel %vm1444, %v1443, %v1184
          %v1499 = vunpack.c.l.b16 %v1446
          %v1500 = vunpack.c.h.b16 %v1446
          %v1501 = vunpack.c.l.b16 %v1448
          %v1502 = vunpack.c.h.b16 %v1448
          %v1503 = vunpack.c.l.b16 %v1450
          %v1504 = vunpack.c.h.b16 %v1450
          %v1505 = vunpack.c.l.b16 %v1452
          %v1506 = vunpack.c.h.b16 %v1452
          %v1507 = vunpack.c.l.b16 %v1454
          %v1508 = vunpack.c.h.b16 %v1454
          %v1509 = vunpack.c.l.b16 %v1456
          %v1510 = vunpack.c.h.b16 %v1456
          %v1511 = vunpack.c.l.b16 %v1458
          %v1512 = vunpack.c.h.b16 %v1458
          %v1513 = vunpack.c.l.b16 %v1460
          %v1514 = vunpack.c.h.b16 %v1460
          %v1515 = vunpack.c.l.b16 %v1462
          %v1516 = vunpack.c.h.b16 %v1462
          %v1517 = vunpack.c.l.b16 %v1464
          %v1518 = vunpack.c.h.b16 %v1464
          %v1519 = vunpack.c.l.b16 %v1466
          %v1520 = vunpack.c.h.b16 %v1466
          %v1521 = vunpack.c.l.b16 %v1468
          %v1522 = vunpack.c.h.b16 %v1468
          %v1523 = vunpack.c.l.b16 %v1470
          %v1524 = vunpack.c.h.b16 %v1470
          %v1525 = vunpack.c.l.b16 %v1472
          %v1526 = vunpack.c.h.b16 %v1472
          %v1527 = vunpack.c.l.b16 %v1474
          %v1528 = vunpack.c.h.b16 %v1474
          %v1529 = vunpack.c.l.b16 %v1476
          %v1530 = vunpack.c.h.b16 %v1476
          %v1531 = vunpack.c.l.b16 %v1478
          %v1532 = vunpack.c.h.b16 %v1478
          %v1533 = vunpack.c.l.b16 %v1480
          %v1534 = vunpack.c.h.b16 %v1480
          %v1535 = vpack.c.b16 %v1499, %v1499
          %v1536 = vpack.c.b16 %v1500, %v1500
          %v1537 = vpack.c.b16 %v1501, %v1501
          %v1538 = vpack.c.b16 %v1502, %v1502
          %v1539 = vpack.c.b16 %v1503, %v1503
          %v1540 = vpack.c.b16 %v1504, %v1504
          %v1541 = vpack.c.b16 %v1505, %v1505
          %v1542 = vpack.c.b16 %v1506, %v1506
          %v1543 = vpack.c.b16 %v1507, %v1507
          %v1544 = vpack.c.b16 %v1508, %v1508
          %v1545 = vpack.c.b16 %v1509, %v1509
          %v1546 = vpack.c.b16 %v1510, %v1510
          %v1547 = vpack.c.b16 %v1511, %v1511
          %v1548 = vpack.c.b16 %v1512, %v1512
          %v1549 = vpack.c.b16 %v1513, %v1513
          %v1550 = vpack.c.b16 %v1514, %v1514
          %v1551 = vpack.c.b16 %v1515, %v1515
          %v1552 = vpack.c.b16 %v1516, %v1516
          %v1553 = vpack.c.b16 %v1517, %v1517
          %v1554 = vpack.c.b16 %v1518, %v1518
          %v1555 = vpack.c.b16 %v1519, %v1519
          %v1556 = vpack.c.b16 %v1520, %v1520
          %v1557 = vpack.c.b16 %v1521, %v1521
          %v1558 = vpack.c.b16 %v1522, %v1522
          %v1559 = vpack.c.b16 %v1523, %v1523
          %v1560 = vpack.c.b16 %v1524, %v1524
          %v1561 = vpack.c.b16 %v1525, %v1525
          %v1562 = vpack.c.b16 %v1526, %v1526
          %v1563 = vpack.c.b16 %v1527, %v1527
          %v1564 = vpack.c.b16 %v1528, %v1528
          %v1565 = vpack.c.b16 %v1529, %v1529
          %v1566 = vpack.c.b16 %v1530, %v1530
          %v1567 = vpack.c.b16 %v1531, %v1531
          %v1568 = vpack.c.b16 %v1532, %v1532
          %v1569 = vpack.c.b16 %v1533, %v1533
          %v1570 = vpack.c.b16 %v1534, %v1534
          %vm1607 = vcmask 289792
          %1608 = vst.msk [vmem:[#allocation2] sm:$0xf] %vm1607, %v1535
          %1609 = vst.msk [vmem:[#allocation2 + $0x4] sm:$0xf] %vm1607, %v1536
          %1610 = vst.msk [vmem:[#allocation2 + $0x8] sm:$0xf] %vm1607, %v1537
          %1611 = vst.msk [vmem:[#allocation2 + $0xc] sm:$0xf] %vm1607, %v1538
          %1612 = vst.msk [vmem:[#allocation2 + $0x10] sm:$0xf] %vm1607, %v1539
          %1613 = vst.msk [vmem:[#allocation2 + $0x14] sm:$0xf] %vm1607, %v1540
          %1614 = vst.msk [vmem:[#allocation2 + $0x18] sm:$0xf] %vm1607, %v1541
          %1615 = vst.msk [vmem:[#allocation2 + $0x1c] sm:$0xf] %vm1607, %v1542
          %1616 = vst.msk [vmem:[#allocation2 + $0x20] sm:$0xf] %vm1607, %v1543
          %1617 = vst.msk [vmem:[#allocation2 + $0x24] sm:$0xf] %vm1607, %v1544
          %1618 = vst.msk [vmem:[#allocation2 + $0x28] sm:$0xf] %vm1607, %v1545
          %1619 = vst.msk [vmem:[#allocation2 + $0x2c] sm:$0xf] %vm1607, %v1546
          %1620 = vst.msk [vmem:[#allocation2 + $0x30] sm:$0xf] %vm1607, %v1547
          %1621 = vst.msk [vmem:[#allocation2 + $0x34] sm:$0xf] %vm1607, %v1548
          %1622 = vst.msk [vmem:[#allocation2 + $0x38] sm:$0xf] %vm1607, %v1549
          %1623 = vst.msk [vmem:[#allocation2 + $0x3c] sm:$0xf] %vm1607, %v1550
          %1624 = vst.msk [vmem:[#allocation2 + $0x40] sm:$0xf] %vm1607, %v1551
          %1625 = vst.msk [vmem:[#allocation2 + $0x44] sm:$0xf] %vm1607, %v1552
          %1626 = vst.msk [vmem:[#allocation2 + $0x48] sm:$0xf] %vm1607, %v1553
          %1627 = vst.msk [vmem:[#allocation2 + $0x4c] sm:$0xf] %vm1607, %v1554
          %1628 = vst.msk [vmem:[#allocation2 + $0x50] sm:$0xf] %vm1607, %v1555
          %1629 = vst.msk [vmem:[#allocation2 + $0x54] sm:$0xf] %vm1607, %v1556
          %1630 = vst.msk [vmem:[#allocation2 + $0x58] sm:$0xf] %vm1607, %v1557
          %1631 = vst.msk [vmem:[#allocation2 + $0x5c] sm:$0xf] %vm1607, %v1558
          %1632 = vst.msk [vmem:[#allocation2 + $0x60] sm:$0xf] %vm1607, %v1559
          %1633 = vst.msk [vmem:[#allocation2 + $0x64] sm:$0xf] %vm1607, %v1560
          %1634 = vst.msk [vmem:[#allocation2 + $0x68] sm:$0xf] %vm1607, %v1561
          %1635 = vst.msk [vmem:[#allocation2 + $0x6c] sm:$0xf] %vm1607, %v1562
          %1636 = vst.msk [vmem:[#allocation2 + $0x70] sm:$0xf] %vm1607, %v1563
          %1637 = vst.msk [vmem:[#allocation2 + $0x74] sm:$0xf] %vm1607, %v1564
          %1638 = vst.msk [vmem:[#allocation2 + $0x78] sm:$0xf] %vm1607, %v1565
          %1639 = vst.msk [vmem:[#allocation2 + $0x7c] sm:$0xf] %vm1607, %v1566
          %1640 = vst.msk [vmem:[#allocation2 + $0x80] sm:$0xf] %vm1607, %v1567
          %1641 = vst.msk [vmem:[#allocation2 + $0x84] sm:$0xf] %vm1607, %v1568
          %1642 = vst.msk [vmem:[#allocation2 + $0x88] sm:$0xf] %vm1607, %v1569
          %1643 = vst.msk [vmem:[#allocation2 + $0x8c] sm:$0xf] %vm1607, %v1570
        $region40: #{tpu_custom_call.1} parent=35 // pred_fallthru
          _
        %v1644 = vld [vmem:[#allocation2] sm:$0xf]
        %v1645 = vld [vmem:[#allocation2 + $0x4] sm:$0xf]
        %v1646 = vld [vmem:[#allocation2 + $0x8] sm:$0xf]
        %v1647 = vld [vmem:[#allocation2 + $0xc] sm:$0xf]
        %v1648 = vld [vmem:[#allocation2 + $0x10] sm:$0xf]
        %v1649 = vld [vmem:[#allocation2 + $0x14] sm:$0xf]
        %v1650 = vld [vmem:[#allocation2 + $0x18] sm:$0xf]
        %v1651 = vld [vmem:[#allocation2 + $0x1c] sm:$0xf]
        %v1652 = vld [vmem:[#allocation2 + $0x20] sm:$0xf]
        %v1653 = vld [vmem:[#allocation2 + $0x24] sm:$0xf]
        %v1654 = vld [vmem:[#allocation2 + $0x28] sm:$0xf]
        %v1655 = vld [vmem:[#allocation2 + $0x2c] sm:$0xf]
        %v1656 = vld [vmem:[#allocation2 + $0x30] sm:$0xf]
        %v1657 = vld [vmem:[#allocation2 + $0x34] sm:$0xf]
        %v1658 = vld [vmem:[#allocation2 + $0x38] sm:$0xf]
        %v1659 = vld [vmem:[#allocation2 + $0x3c] sm:$0xf]
        %v1660 = vld [vmem:[#allocation2 + $0x40] sm:$0xf]
        %v1661 = vld [vmem:[#allocation2 + $0x44] sm:$0xf]
        %v1662 = vld [vmem:[#allocation2 + $0x48] sm:$0xf]
        %v1663 = vld [vmem:[#allocation2 + $0x4c] sm:$0xf]
        %v1664 = vld [vmem:[#allocation2 + $0x50] sm:$0xf]
        %v1665 = vld [vmem:[#allocation2 + $0x54] sm:$0xf]
        %v1666 = vld [vmem:[#allocation2 + $0x58] sm:$0xf]
        %v1667 = vld [vmem:[#allocation2 + $0x5c] sm:$0xf]
        %v1668 = vld [vmem:[#allocation2 + $0x60] sm:$0xf]
        %v1669 = vld [vmem:[#allocation2 + $0x64] sm:$0xf]
        %v1670 = vld [vmem:[#allocation2 + $0x68] sm:$0xf]
        %v1671 = vld [vmem:[#allocation2 + $0x6c] sm:$0xf]
        %v1672 = vld [vmem:[#allocation2 + $0x70] sm:$0xf]
        %v1673 = vld [vmem:[#allocation2 + $0x74] sm:$0xf]
        %v1674 = vld [vmem:[#allocation2 + $0x78] sm:$0xf]
        %v1675 = vld [vmem:[#allocation2 + $0x7c] sm:$0xf]
        %v1676 = vld [vmem:[#allocation2 + $0x80] sm:$0xf]
        %v1677 = vld [vmem:[#allocation2 + $0x84] sm:$0xf]
        %v1678 = vld [vmem:[#allocation2 + $0x88] sm:$0xf]
        %v1679 = vld [vmem:[#allocation2 + $0x8c] sm:$0xf]
        %v1680 = vld [vmem:[%s248] sm:$0xf]
        %v1681 = vld [vmem:[%s248 + $0x4] sm:$0xf]
        %v1682 = vld [vmem:[%s248 + $0x8] sm:$0xf]
        %v1683 = vld [vmem:[%s248 + $0xc] sm:$0xf]
        %v1684 = vld [vmem:[%s248 + $0x10] sm:$0x3]
        %v1721 = vunpack.c.l.b16 %v1644
        %v1722 = vunpack.c.l.b16 %v1645
        %v1723 = vunpack.c.l.b16 %v1646
        %v1724 = vunpack.c.l.b16 %v1647
        %v1725 = vunpack.c.l.b16 %v1648
        %v1726 = vunpack.c.l.b16 %v1649
        %v1727 = vunpack.c.l.b16 %v1650
        %v1728 = vunpack.c.l.b16 %v1651
        %v1729 = vunpack.c.l.b16 %v1652
        %v1730 = vunpack.c.l.b16 %v1653
        %v1731 = vunpack.c.l.b16 %v1654
        %v1732 = vunpack.c.l.b16 %v1655
        %v1733 = vunpack.c.l.b16 %v1656
        %v1734 = vunpack.c.l.b16 %v1657
        %v1735 = vunpack.c.l.b16 %v1658
        %v1736 = vunpack.c.l.b16 %v1659
        %v1737 = vunpack.c.l.b16 %v1660
        %v1738 = vunpack.c.l.b16 %v1661
        %v1739 = vunpack.c.l.b16 %v1662
        %v1740 = vunpack.c.l.b16 %v1663
        %v1741 = vunpack.c.l.b16 %v1664
        %v1742 = vunpack.c.l.b16 %v1665
        %v1743 = vunpack.c.l.b16 %v1666
        %v1744 = vunpack.c.l.b16 %v1667
        %v1745 = vunpack.c.l.b16 %v1668
        %v1746 = vunpack.c.l.b16 %v1669
        %v1747 = vunpack.c.l.b16 %v1670
        %v1748 = vunpack.c.l.b16 %v1671
        %v1749 = vunpack.c.l.b16 %v1672
        %v1750 = vunpack.c.l.b16 %v1673
        %v1751 = vunpack.c.l.b16 %v1674
        %v1752 = vunpack.c.l.b16 %v1675
        %v1753 = vunpack.c.l.b16 %v1676
        %v1754 = vunpack.c.l.b16 %v1677
        %v1755 = vunpack.c.l.b16 %v1678
        %v1756 = vunpack.c.l.b16 %v1679
        %v1757 = vpack.c.b16 %v1722, %v1721
        %v1758 = vpack.c.b16 %v1724, %v1723
        %v1759 = vpack.c.b16 %v1726, %v1725
        %v1760 = vpack.c.b16 %v1728, %v1727
        %v1761 = vpack.c.b16 %v1730, %v1729
        %v1762 = vpack.c.b16 %v1732, %v1731
        %v1763 = vpack.c.b16 %v1734, %v1733
        %v1764 = vpack.c.b16 %v1736, %v1735
        %v1765 = vpack.c.b16 %v1738, %v1737
        %v1766 = vpack.c.b16 %v1740, %v1739
        %v1767 = vpack.c.b16 %v1742, %v1741
        %v1768 = vpack.c.b16 %v1744, %v1743
        %v1769 = vpack.c.b16 %v1746, %v1745
        %v1770 = vpack.c.b16 %v1748, %v1747
        %v1771 = vpack.c.b16 %v1750, %v1749
        %v1772 = vpack.c.b16 %v1752, %v1751
        %v1773 = vpack.c.b16 %v1754, %v1753
        %v1774 = vpack.c.b16 %v1756, %v1755
        %v1780 = vunpack.c.l.b16 %v1680
        %v1781 = vunpack.c.l.b16 %v1681
        %v1782 = vunpack.c.l.b16 %v1682
        %v1783 = vunpack.c.l.b16 %v1683
        %v1784 = vunpack.c.l.b16 %v1684
        %v1785 = vpack.c.b16 %v1781, %v1780
        %v1786 = vpack.c.b16 %v1783, %v1782
        %v1787 = vpack.c.b16 %v1784, %v1784
        %vm1790 = vcmask 293888
        %v1792 = vsel %vm1790, %v1757, 0
        %v1795 = vsel %vm1790, %v1758, 0
        %v1798 = vsel %vm1790, %v1759, 0
        %v1801 = vsel %vm1790, %v1760, 0
        %v1804 = vsel %vm1790, %v1761, 0
        %v1807 = vsel %vm1790, %v1762, 0
        %v1810 = vsel %vm1790, %v1763, 0
        %v1813 = vsel %vm1790, %v1764, 0
        %v1816 = vsel %vm1790, %v1765, 0
        %v1819 = vsel %vm1790, %v1766, 0
        %v1822 = vsel %vm1790, %v1767, 0
        %v1825 = vsel %vm1790, %v1768, 0
        %v1828 = vsel %vm1790, %v1769, 0
        %v1831 = vsel %vm1790, %v1770, 0
        %v1834 = vsel %vm1790, %v1771, 0
        %v1837 = vsel %vm1790, %v1772, 0
        %v1840 = vsel %vm1790, %v1773, 0
        %v1843 = vsel %vm1790, %v1774, 0
        %vm1845 = vcmask 1041408
        %v1847 = vsel %vm1845, %v1787, 0
        %1849 = vmatpush.bf16.msra.mxu0 0
        %1850 = vmatpush.bf16.msra.mxu0 0
        %1851 = vmatpush.bf16.msra.mxu0 0
        %1852 = vmatpush.bf16.msra.mxu0 0
        %1853 = vmatpush.bf16.msra.mxu0 0
        %1854 = vmatpush.bf16.msra.mxu0 %v1847
        %1855 = vmatpush.bf16.msra.mxu0 %v1786
        %1856 = vmatpush.bf16.msra.mxu0 %v1785
        %1857 = vmatmul.bf16.gmra.mxu0 %v1792
        %v1858 = vpop.f32.mrf.mxu0
        %v1859 = vadd.f32 0.0, %v1858
        %v1860 = vpop.f32.mrf.mxu0
        %v1861 = vadd.f32 0.0, %v1860
        %1862 = vmatmul.bf16.gmra.mxu0 %v1795
        %v1863 = vpop.f32.mrf.mxu0
        %v1864 = vadd.f32 0.0, %v1863
        %v1865 = vpop.f32.mrf.mxu0
        %v1866 = vadd.f32 0.0, %v1865
        %1867 = vmatmul.bf16.gmra.mxu0 %v1798
        %v1868 = vpop.f32.mrf.mxu0
        %v1869 = vadd.f32 0.0, %v1868
        %v1870 = vpop.f32.mrf.mxu0
        %v1871 = vadd.f32 0.0, %v1870
        %1872 = vmatmul.bf16.gmra.mxu0 %v1801
        %v1873 = vpop.f32.mrf.mxu0
        %v1874 = vadd.f32 0.0, %v1873
        %v1875 = vpop.f32.mrf.mxu0
        %v1876 = vadd.f32 0.0, %v1875
        %1877 = vmatmul.bf16.gmra.mxu0 %v1804
        %v1878 = vpop.f32.mrf.mxu0
        %v1879 = vadd.f32 0.0, %v1878
        %v1880 = vpop.f32.mrf.mxu0
        %v1881 = vadd.f32 0.0, %v1880
        %1882 = vmatmul.bf16.gmra.mxu0 %v1807
        %v1883 = vpop.f32.mrf.mxu0
        %v1884 = vadd.f32 0.0, %v1883
        %v1885 = vpop.f32.mrf.mxu0
        %v1886 = vadd.f32 0.0, %v1885
        %1887 = vmatmul.bf16.gmra.mxu0 %v1810
        %v1888 = vpop.f32.mrf.mxu0
        %v1889 = vadd.f32 0.0, %v1888
        %v1890 = vpop.f32.mrf.mxu0
        %v1891 = vadd.f32 0.0, %v1890
        %1892 = vmatmul.bf16.gmra.mxu0 %v1813
        %v1893 = vpop.f32.mrf.mxu0
        %v1894 = vadd.f32 0.0, %v1893
        %v1895 = vpop.f32.mrf.mxu0
        %v1896 = vadd.f32 0.0, %v1895
        %1897 = vmatmul.bf16.gmra.mxu0 %v1816
        %v1898 = vpop.f32.mrf.mxu0
        %v1899 = vadd.f32 0.0, %v1898
        %v1900 = vpop.f32.mrf.mxu0
        %v1901 = vadd.f32 0.0, %v1900
        %1902 = vmatmul.bf16.gmra.mxu0 %v1819
        %v1903 = vpop.f32.mrf.mxu0
        %v1904 = vadd.f32 0.0, %v1903
        %v1905 = vpop.f32.mrf.mxu0
        %v1906 = vadd.f32 0.0, %v1905
        %1907 = vmatmul.bf16.gmra.mxu0 %v1822
        %v1908 = vpop.f32.mrf.mxu0
        %v1909 = vadd.f32 0.0, %v1908
        %v1910 = vpop.f32.mrf.mxu0
        %v1911 = vadd.f32 0.0, %v1910
        %1912 = vmatmul.bf16.gmra.mxu0 %v1825
        %v1913 = vpop.f32.mrf.mxu0
        %v1914 = vadd.f32 0.0, %v1913
        %v1915 = vpop.f32.mrf.mxu0
        %v1916 = vadd.f32 0.0, %v1915
        %1917 = vmatmul.bf16.gmra.mxu0 %v1828
        %v1918 = vpop.f32.mrf.mxu0
        %v1919 = vadd.f32 0.0, %v1918
        %v1920 = vpop.f32.mrf.mxu0
        %v1921 = vadd.f32 0.0, %v1920
        %1922 = vmatmul.bf16.gmra.mxu0 %v1831
        %v1923 = vpop.f32.mrf.mxu0
        %v1924 = vadd.f32 0.0, %v1923
        %v1925 = vpop.f32.mrf.mxu0
        %v1926 = vadd.f32 0.0, %v1925
        %1927 = vmatmul.bf16.gmra.mxu0 %v1834
        %v1928 = vpop.f32.mrf.mxu0
        %v1929 = vadd.f32 0.0, %v1928
        %v1930 = vpop.f32.mrf.mxu0
        %v1931 = vadd.f32 0.0, %v1930
        %1932 = vmatmul.bf16.gmra.mxu0 %v1837
        %v1933 = vpop.f32.mrf.mxu0
        %v1934 = vadd.f32 0.0, %v1933
        %v1935 = vpop.f32.mrf.mxu0
        %v1936 = vadd.f32 0.0, %v1935
        %1937 = vmatmul.bf16.gmra.mxu0 %v1840
        %v1938 = vpop.f32.mrf.mxu0
        %v1939 = vadd.f32 0.0, %v1938
        %v1940 = vpop.f32.mrf.mxu0
        %v1941 = vadd.f32 0.0, %v1940
        %1942 = vmatmul.bf16.gmra.mxu0 %v1843
        %v1943 = vpop.f32.mrf.mxu0
        %v1944 = vadd.f32 0.0, %v1943
        %v1945 = vpop.f32.mrf.mxu0
        %v1946 = vadd.f32 0.0, %v1945
        %1947 = vdwg.mxu0
        %v1948 = vld [vmem:[%s251] sm:$0x1]
        %v1950 = vperm.slane %v1948, 0
        %v1952 = vmul.f32 %v1859, %v1950
        %v1953 = vmul.f32 %v1861, %v1950
        %v1954 = vmul.f32 %v1864, %v1950
        %v1955 = vmul.f32 %v1866, %v1950
        %v1956 = vmul.f32 %v1869, %v1950
        %v1957 = vmul.f32 %v1871, %v1950
        %v1958 = vmul.f32 %v1874, %v1950
        %v1959 = vmul.f32 %v1876, %v1950
        %v1960 = vmul.f32 %v1879, %v1950
        %v1961 = vmul.f32 %v1881, %v1950
        %v1962 = vmul.f32 %v1884, %v1950
        %v1963 = vmul.f32 %v1886, %v1950
        %v1964 = vmul.f32 %v1889, %v1950
        %v1965 = vmul.f32 %v1891, %v1950
        %v1966 = vmul.f32 %v1894, %v1950
        %v1967 = vmul.f32 %v1896, %v1950
        %v1968 = vmul.f32 %v1899, %v1950
        %v1969 = vmul.f32 %v1901, %v1950
        %v1970 = vmul.f32 %v1904, %v1950
        %v1971 = vmul.f32 %v1906, %v1950
        %v1972 = vmul.f32 %v1909, %v1950
        %v1973 = vmul.f32 %v1911, %v1950
        %v1974 = vmul.f32 %v1914, %v1950
        %v1975 = vmul.f32 %v1916, %v1950
        %v1976 = vmul.f32 %v1919, %v1950
        %v1977 = vmul.f32 %v1921, %v1950
        %v1978 = vmul.f32 %v1924, %v1950
        %v1979 = vmul.f32 %v1926, %v1950
        %v1980 = vmul.f32 %v1929, %v1950
        %v1981 = vmul.f32 %v1931, %v1950
        %v1982 = vmul.f32 %v1934, %v1950
        %v1983 = vmul.f32 %v1936, %v1950
        %v1984 = vmul.f32 %v1939, %v1950
        %v1985 = vmul.f32 %v1941, %v1950
        %v1986 = vmul.f32 %v1944, %v1950
        %v1987 = vmul.f32 %v1946, %v1950
        %v1988 = vld [vmem:[%s254] sm:$0x1]
        %v1990 = vperm.slane %v1988, 0
        %v1992 = vadd.f32 %v1952, %v1990
        %v1993 = vadd.f32 %v1953, %v1990
        %v1994 = vadd.f32 %v1954, %v1990
        %v1995 = vadd.f32 %v1955, %v1990
        %v1996 = vadd.f32 %v1956, %v1990
        %v1997 = vadd.f32 %v1957, %v1990
        %v1998 = vadd.f32 %v1958, %v1990
        %v1999 = vadd.f32 %v1959, %v1990
        %v2000 = vadd.f32 %v1960, %v1990
        %v2001 = vadd.f32 %v1961, %v1990
        %v2002 = vadd.f32 %v1962, %v1990
        %v2003 = vadd.f32 %v1963, %v1990
        %v2004 = vadd.f32 %v1964, %v1990
        %v2005 = vadd.f32 %v1965, %v1990
        %v2006 = vadd.f32 %v1966, %v1990
        %v2007 = vadd.f32 %v1967, %v1990
        %v2008 = vadd.f32 %v1968, %v1990
        %v2009 = vadd.f32 %v1969, %v1990
        %v2010 = vadd.f32 %v1970, %v1990
        %v2011 = vadd.f32 %v1971, %v1990
        %v2012 = vadd.f32 %v1972, %v1990
        %v2013 = vadd.f32 %v1973, %v1990
        %v2014 = vadd.f32 %v1974, %v1990
        %v2015 = vadd.f32 %v1975, %v1990
        %v2016 = vadd.f32 %v1976, %v1990
        %v2017 = vadd.f32 %v1977, %v1990
        %v2018 = vadd.f32 %v1978, %v1990
        %v2019 = vadd.f32 %v1979, %v1990
        %v2020 = vadd.f32 %v1980, %v1990
        %v2021 = vadd.f32 %v1981, %v1990
        %v2022 = vadd.f32 %v1982, %v1990
        %v2023 = vadd.f32 %v1983, %v1990
        %v2024 = vadd.f32 %v1984, %v1990
        %v2025 = vadd.f32 %v1985, %v1990
        %v2026 = vadd.f32 %v1986, %v1990
        %v2027 = vadd.f32 %v1987, %v1990
        %v2028 = vmax.f32 %v1992, 0.0
        %v2029 = vmax.f32 %v1993, 0.0
        %v2030 = vmax.f32 %v1994, 0.0
        %v2031 = vmax.f32 %v1995, 0.0
        %v2032 = vmax.f32 %v1996, 0.0
        %v2033 = vmax.f32 %v1997, 0.0
        %v2034 = vmax.f32 %v1998, 0.0
        %v2035 = vmax.f32 %v1999, 0.0
        %v2036 = vmax.f32 %v2000, 0.0
        %v2037 = vmax.f32 %v2001, 0.0
        %v2038 = vmax.f32 %v2002, 0.0
        %v2039 = vmax.f32 %v2003, 0.0
        %v2040 = vmax.f32 %v2004, 0.0
        %v2041 = vmax.f32 %v2005, 0.0
        %v2042 = vmax.f32 %v2006, 0.0
        %v2043 = vmax.f32 %v2007, 0.0
        %v2044 = vmax.f32 %v2008, 0.0
        %v2045 = vmax.f32 %v2009, 0.0
        %v2046 = vmax.f32 %v2010, 0.0
        %v2047 = vmax.f32 %v2011, 0.0
        %v2048 = vmax.f32 %v2012, 0.0
        %v2049 = vmax.f32 %v2013, 0.0
        %v2050 = vmax.f32 %v2014, 0.0
        %v2051 = vmax.f32 %v2015, 0.0
        %v2052 = vmax.f32 %v2016, 0.0
        %v2053 = vmax.f32 %v2017, 0.0
        %v2054 = vmax.f32 %v2018, 0.0
        %v2055 = vmax.f32 %v2019, 0.0
        %v2056 = vmax.f32 %v2020, 0.0
        %v2057 = vmax.f32 %v2021, 0.0
        %v2058 = vmax.f32 %v2022, 0.0
        %v2059 = vmax.f32 %v2023, 0.0
        %v2060 = vmax.f32 %v2024, 0.0
        %v2061 = vmax.f32 %v2025, 0.0
        %v2062 = vmax.f32 %v2026, 0.0
        %v2063 = vmax.f32 %v2027, 0.0
        %2064 = vst [vmem:[%s239] sm:$0xff] %v2028
        %2065 = vst [vmem:[%s239 + $0x8] sm:$0xff] %v2029
        %2066 = vst [vmem:[%s239 + $0x10] sm:$0xff] %v2030
        %2067 = vst [vmem:[%s239 + $0x18] sm:$0xff] %v2031
        %2068 = vst [vmem:[%s239 + $0x20] sm:$0xff] %v2032
        %2069 = vst [vmem:[%s239 + $0x28] sm:$0xff] %v2033
        %2070 = vst [vmem:[%s239 + $0x30] sm:$0xff] %v2034
        %2071 = vst [vmem:[%s239 + $0x38] sm:$0xff] %v2035
        %2072 = vst [vmem:[%s239 + $0x40] sm:$0xff] %v2036
        %2073 = vst [vmem:[%s239 + $0x48] sm:$0xff] %v2037
        %2074 = vst [vmem:[%s239 + $0x50] sm:$0xff] %v2038
        %2075 = vst [vmem:[%s239 + $0x58] sm:$0xff] %v2039
        %2076 = vst [vmem:[%s239 + $0x60] sm:$0xff] %v2040
        %2077 = vst [vmem:[%s239 + $0x68] sm:$0xff] %v2041
        %2078 = vst [vmem:[%s239 + $0x70] sm:$0xff] %v2042
        %2079 = vst [vmem:[%s239 + $0x78] sm:$0xff] %v2043
        %2080 = vst [vmem:[%s239 + $0x80] sm:$0xff] %v2044
        %2081 = vst [vmem:[%s239 + $0x88] sm:$0xff] %v2045
        %2082 = vst [vmem:[%s239 + $0x90] sm:$0xff] %v2046
        %2083 = vst [vmem:[%s239 + $0x98] sm:$0xff] %v2047
        %2084 = vst [vmem:[%s239 + $0xa0] sm:$0xff] %v2048
        %2085 = vst [vmem:[%s239 + $0xa8] sm:$0xff] %v2049
        %2086 = vst [vmem:[%s239 + $0xb0] sm:$0xff] %v2050
        %2087 = vst [vmem:[%s239 + $0xb8] sm:$0xff] %v2051
        %2088 = vst [vmem:[%s239 + $0xc0] sm:$0xff] %v2052
        %2089 = vst [vmem:[%s239 + $0xc8] sm:$0xff] %v2053
        %2090 = vst [vmem:[%s239 + $0xd0] sm:$0xff] %v2054
        %2091 = vst [vmem:[%s239 + $0xd8] sm:$0xff] %v2055
        %2092 = vst [vmem:[%s239 + $0xe0] sm:$0xff] %v2056
        %2093 = vst [vmem:[%s239 + $0xe8] sm:$0xff] %v2057
        %2094 = vst [vmem:[%s239 + $0xf0] sm:$0xff] %v2058
        %2095 = vst [vmem:[%s239 + $0xf8] sm:$0xff] %v2059
        %2096 = vst [vmem:[%s239 + $0x100] sm:$0xff] %v2060
        %2097 = vst [vmem:[%s239 + $0x108] sm:$0xff] %v2061
        %2098 = vst [vmem:[%s239 + $0x110] sm:$0xff] %v2062
        %2099 = vst [vmem:[%s239 + $0x118] sm:$0xff] %v2063
        %s2100 = sand.u32 %s144, 1
        %s2101 = scalar_lea.sflag [#allocation4], %s2100
        %s2102 = sand.u32 %s144, 1
        %s2103 = smul.addr %s2102, 288
        %s2104 = scalar_lea.vmem [#allocation3], %s2103
        // Predicated region
        $region41: #{tpu_custom_call.1} parent=35 // pred_check
          %p2105 = pneg %p154
        $region42: #{tpu_custom_call.1} parent=35 // pred_check_branch
          %2107 = sbr.rel (%p2105) target = $region44
        $region43: #{tpu_custom_call.1} parent=35 // pred_region
          %2109 = vsyncadd %s2101, 0
          %s2110 = smul.addr %s22, 36
          %s2111 = sadd.s32 %s23, %s2110
          %s2112 = smul.addr %s2111, 8
          %s2113 = scalar_lea.hbm %s4, %s2112
          %s2114 = sshll.u32 %s2104, 4
          %s2115 = int_to_ptr.vmem [resolvable:$true] %s2114
          %s2116 = sshll.u32 %s2113, 4
          %s2117 = int_to_ptr.hbm [resolvable:$true] %s2116
          %2122 = dma.vmem_to_hbm [thread:$0]  %s2115, 4608, %s2117, %s2101, 128, 128, 8
        $region44: #{tpu_custom_call.1} parent=35 // pred_fallthru
          _
      $region36: #{tpu_custom_call.1} parent=5 // pred_fallthru
        _
      %p2123 = scmp.le.s32.totalorder 2, %s13
      // Predicated region
      $region45: #{tpu_custom_call.1} parent=5 // pred_check
        %p2124 = pneg %p2123
      $region46: #{tpu_custom_call.1} parent=5 // pred_check_branch
        %2126 = sbr.rel (%p2124) target = $region48
      $region47: #{tpu_custom_call.1} parent=5 // pred_region
        %s2127 = ssub.s32 %s13, 2
        // Predicated region
        $region49: #{tpu_custom_call.1} parent=47 // pred_check
          %p2128 = pneg %p160
        $region50: #{tpu_custom_call.1} parent=47 // pred_check_branch
          %2130 = sbr.rel (%p2128) target = $region52
        $region51: #{tpu_custom_call.1} parent=47 // pred_region
          %s2131 = sand.u32 %s145, 1
          %s2132 = scalar_lea.sflag [#allocation4], %s2131
          %s2133 = sand.u32 %s145, 1
          %s2134 = smul.addr %s2133, 288
          %s2135 = scalar_lea.vmem [#allocation3], %s2134
          %2137 = dma.done %s2132, 4608
        $region52: #{tpu_custom_call.1} parent=47 // pred_fallthru
          _
      $region48: #{tpu_custom_call.1} parent=5 // pred_fallthru
        _
    $region6: #{tpu_custom_call.1} parent=1 // loop_footer
      %s17 = sadd.s32 1, %s13
    $region7: #{tpu_custom_call.1} parent=1 // loop_footer_branch
      %12 = sbr.rel target = $region3
    $region8: #{tpu_custom_call.1} parent=1 // loop_exit
      _
    %2138 = vsyncpa [#allocation4], 1
    %s2139 = scalar_lea.sflag [#allocation4], 1
    %2140 = vsyncpa %s2139, 1

</llo_original>
